<compile_context>
chip_gen: v6e
topology: v6e:2x2x1
jax: 0.10.0
libtpu: 0.0.40
codegen_flags: <defaults>
</compile_context>

<pallas_src>
import functools

import jax
import jax.numpy as jnp
from jax import lax
from jax.experimental import pallas as pl
from jax.experimental.pallas import tpu as pltpu


# ----------------------------------------------------------------------------
# Traced helpers (run inside kernels)
# ----------------------------------------------------------------------------
def _layernorm(x, g, b, eps=1e-5):
    # x: (L, D) f32 ; g, b: (1, D) f32
    mean = jnp.mean(x, axis=-1, keepdims=True)
    c = x - mean
    var = jnp.mean(c * c, axis=-1, keepdims=True)
    return c * lax.rsqrt(var + eps) * g + b


def _mha_ctx(q16, kv16, *, num_heads):
    """Multi-head attention context.

    q16: (M, D) bf16 projected queries; kv16: (L, 2D) bf16 packed [K | V].
    Returns (M, D) f32 concatenated head contexts (output projection is done
    by the caller as ONE full-K matmul).
    """
    D = q16.shape[-1]
    hd = D // num_heads
    scale = 1.0 / float(hd) ** 0.5
    ctxs = []
    for h in range(num_heads):          # static loop (H small)
        hs = h * hd
        qh = q16[:, hs:hs + hd]                     # (M, hd) bf16
        kh = kv16[:, hs:hs + hd]                    # (L, hd) bf16
        vh = kv16[:, D + hs:D + hs + hd]            # (L, hd) bf16
        # Contract last dims of Q_h and K_h -> (M, L); no explicit K transpose.
        s = lax.dot_general(qh, kh, (((1,), (1,)), ((), ())),
                            preferred_element_type=jnp.float32) * scale
        s = s - jnp.max(s, axis=-1, keepdims=True)          # f32 softmax
        p = jnp.exp(s)
        p = p * pl.reciprocal(jnp.sum(p, axis=-1, keepdims=True), approx=True)
        ctxs.append(jnp.dot(p.astype(jnp.bfloat16), vh,
                            preferred_element_type=jnp.float32))
    return jnp.concatenate(ctxs, axis=-1)           # (M, D) f32


def _vmem_limit(weight_bytes, act_bytes_per_step, temp_bytes):
    est = weight_bytes + 2 * act_bytes_per_step + temp_bytes
    est = int(est * 1.5) + (4 << 20)                # headroom
    return max(32 << 20, min(est, 128 << 20))


def _pick_bt(batch, q_len, bt_max=4):
    """Batch-block size for kernel 2 (keeps flattened query rows layout-legal)."""
    if q_len % 8 == 0:
        bt = max(1, min(bt_max, batch))
        while batch % bt:
            bt -= 1
        return bt
    # q_len not sublane aligned: use the whole batch so the flattened block
    # equals the full axis (always layout-legal).
    return batch


# ----------------------------------------------------------------------------
# Kernel 1: attn1(query_token, embedding, embedding)  -- one batch per grid step
# ----------------------------------------------------------------------------
def _attn1_kernel(qtok_ref, emb_ref, wq_ref, bq_ref, wkv_ref, bkv_ref,
                  wo_ref, bo_ref, o_ref, *, num_heads):
    q16 = qtok_ref[0].astype(jnp.bfloat16)          # (Qn, D), shared across batch
    kv16 = emb_ref[0].astype(jnp.bfloat16)          # (Se, D)
    q_p = jnp.dot(q16, wq_ref[...], preferred_element_type=jnp.float32) + bq_ref[...]
    kv_p = jnp.dot(kv16, wkv_ref[...], preferred_element_type=jnp.float32) + bkv_ref[...]
    ctx = _mha_ctx(q_p.astype(jnp.bfloat16), kv_p.astype(jnp.bfloat16),
                   num_heads=num_heads)
    out = jnp.dot(ctx.astype(jnp.bfloat16), wo_ref[...],
                  preferred_element_type=jnp.float32) + bo_ref[...]
    o_ref[0] = out.astype(o_ref.dtype)              # bf16 intermediate


def attn1_call(query_token, embedding, attn_p, *, num_heads,
               single_buffer_weights=True):
    B, Se, D = embedding.shape
    Qn = query_token.shape[1]
    wq, bq, wkv, bkv, wo, bo = attn_p
    kernel = functools.partial(_attn1_kernel, num_heads=num_heads)

    def wspec(shape):
        kwargs = {}
        if single_buffer_weights:
            kwargs["pipeline_mode"] = pl.Buffered(1)     # constant index -> 1 buffer
        return pl.BlockSpec(shape, lambda b: (0,) * len(shape), **kwargs)

    wbytes = (wq.size + wkv.size + wo.size) * 2 + (bq.size + bkv.size + bo.size) * 4
    act_step = Se * D * 4 + Qn * D * 4 + Qn * D * 2
    vmem = _vmem_limit(wbytes if single_buffer_weights else 2 * wbytes,
                       act_step, Se * 2 * D * 6 + Qn * D * 16)
    flops = B * (4 * Qn * D * D + 4 * Se * D * D + 4 * Qn * Se * D)
    transc = B * num_heads * Qn * Se
    bytes_acc = wbytes + query_token.size * 4 + embedding.size * 4 + B * Qn * D * 2

    return pl.pallas_call(
        kernel,
        out_shape=jax.ShapeDtypeStruct((B, Qn, D), jnp.bfloat16),
        grid=(B,),
        in_specs=[
            wspec((1, Qn, D)),                              # shared query tokens
            pl.BlockSpec((1, Se, D), lambda b: (b, 0, 0)),  # embedding (per batch)
            wspec((D, D)), wspec((1, D)),                   # wq, bq
            wspec((D, 2 * D)), wspec((1, 2 * D)),           # wkv packed [K|V], bkv
            wspec((D, D)), wspec((1, D)),                   # wo, bo
        ],
        out_specs=pl.BlockSpec((1, Qn, D), lambda b: (b, 0, 0)),
        compiler_params=pltpu.CompilerParams(
            dimension_semantics=("parallel",),
            vmem_limit_bytes=vmem),
        cost_estimate=pl.CostEstimate(flops=flops, transcendentals=transc,
                                      bytes_accessed=bytes_acc),
    )(query_token, embedding, wq, bq, wkv, bkv, wo, bo)


# ----------------------------------------------------------------------------
# Kernel 2: fused branch  concat -> LN1 -> attn2 -> LN2 -> MLP + residual
#   grid = (B // Bt, num_branches); both axes parallel; Bt batches per step.
# ----------------------------------------------------------------------------
def _branch_kernel(attn_emb_ref, x_ref, emb_ref,
                   ln1g_ref, ln1b_ref,
                   wq_ref, bq_ref, wkv_ref, bkv_ref, wo_ref, bo_ref,
                   ln2g_ref, ln2b_ref,
                   w1_ref, b1_ref, w2_ref, b2_ref,
                   o_ref, *, num_heads, q_len, bt):
    # Batched Q projection over all bt*q_len query rows (one full-M matmul).
    q16 = attn_emb_ref[...]                                   # (bt*Qn, D) bf16
    q_p = jnp.dot(q16, wq_ref[...], preferred_element_type=jnp.float32) + bq_ref[...]
    q_p16 = q_p.astype(jnp.bfloat16)

    ln1g = ln1g_ref[...]
    ln1b = ln1b_ref[...]
    ctxs = []
    for b in range(bt):                                       # static batch unroll
        # concat(x_b, embedding_b) entirely in VMEM (no HBM round trip).
        xc = jnp.concatenate([x_ref[0, b], emb_ref[b]], axis=0)   # (L, D) f32
        nx = _layernorm(xc, ln1g, ln1b)
        kv = jnp.dot(nx.astype(jnp.bfloat16), wkv_ref[...],
                     preferred_element_type=jnp.float32) + bkv_ref[...]
        qb = q_p16[b * q_len:(b + 1) * q_len, :]
        ctxs.append(_mha_ctx(qb, kv.astype(jnp.bfloat16), num_heads=num_heads))
    ctx = jnp.concatenate(ctxs, axis=0)                       # (bt*Qn, D) f32

    # Single full-K output projection + LN2 + MLP over all bt*Qn rows.
    attn_x = jnp.dot(ctx.astype(jnp.bfloat16), wo_ref[...],
                     preferred_element_type=jnp.float32) + bo_ref[...]
    nx2 = _layernorm(attn_x, ln2g_ref[...], ln2b_ref[...])
    h = jnp.dot(nx2.astype(jnp.bfloat16), w1_ref[...],
                preferred_element_type=jnp.float32) + b1_ref[...]
    h = jax.nn.gelu(h, approximate=False)                     # nn.GELU() = exact erf
    out = jnp.dot(h.astype(jnp.bfloat16), w2_ref[...],
                  preferred_element_type=jnp.float32) + b2_ref[...] + attn_x
    o_ref[0] = out.astype(o_ref.dtype)


def fused_branch_call(x_stack, embedding, attn_emb_flat, p, *, num_heads, bt,
                      single_buffer_weights=True):
    G, B, S, D = x_stack.shape
    Se = embedding.shape[1]
    q_len = attn_emb_flat.shape[0] // B
    nb = B // bt
    L = S + Se
    wq, bq, wkv, bkv, wo, bo = p["attn2"]
    Dh = p["w1"].shape[1]
    kernel = functools.partial(_branch_kernel, num_heads=num_heads,
                               q_len=q_len, bt=bt)

    def wspec(shape):
        kwargs = {}
        if single_buffer_weights:
            kwargs["pipeline_mode"] = pl.Buffered(1)     # constant index -> 1 buffer
        return pl.BlockSpec(shape, lambda bi, t: (0,) * len(shape), **kwargs)

    wbytes = (2 * (wq.size + wkv.size + wo.size + p["w1"].size + p["w2"].size)
              + 4 * (bq.size + bkv.size + bo.size + p["b1"].size + p["b2"].size + 4 * D))
    act_step = bt * (S * D * 4 + Se * D * 4 + q_len * D * 2 + q_len * D * 4)
    temp = L * D * 24 + bt * q_len * D * 16 + bt * q_len * Dh * 4
    vmem = _vmem_limit(wbytes if single_buffer_weights else 2 * wbytes,
                       act_step, temp)

    flops = G * B * (2 * q_len * D * D            # Q proj
                     + 4 * L * D * D              # KV proj
                     + 4 * q_len * L * D          # scores + ctx
                     + 2 * q_len * D * D          # out proj
                     + 8 * q_len * D * D)         # MLP  (D -> 2D -> D)
    transc = G * B * (num_heads * q_len * L + q_len * Dh)
    bytes_acc = (G * B * (S * D * 4 + Se * D * 4 + q_len * D * 2 + q_len * D * 4)
                 + wbytes)

    return pl.pallas_call(
        kernel,
        out_shape=jax.ShapeDtypeStruct((G, B * q_len, D), jnp.float32),
        grid=(nb, G),
        in_specs=[
            pl.BlockSpec((bt * q_len, D), lambda bi, t: (bi, 0)),      # attn_embedding (bf16)
            pl.BlockSpec((1, bt, S, D), lambda bi, t: (t, bi, 0, 0)),  # stacked x1/x2
            pl.BlockSpec((bt, Se, D), lambda bi, t: (bi, 0, 0)),       # embedding (branch-shared)
            wspec((1, D)), wspec((1, D)),                  # LN1 g, b
            wspec((D, D)), wspec((1, D)),                  # wq, bq
            wspec((D, 2 * D)), wspec((1, 2 * D)),          # wkv packed [K|V], bkv
            wspec((D, D)), wspec((1, D)),                  # wo, bo
            wspec((1, D)), wspec((1, D)),                  # LN2 g, b
            wspec((D, Dh)), wspec((1, Dh)),                # w1, b1
            wspec((Dh, D)), wspec((1, D)),                 # w2, b2
        ],
        out_specs=pl.BlockSpec((1, bt * q_len, D), lambda bi, t: (t, bi, 0)),
        compiler_params=pltpu.CompilerParams(
            dimension_semantics=("parallel", "parallel"),
            vmem_limit_bytes=vmem),
        cost_estimate=pl.CostEstimate(flops=flops, transcendentals=transc,
                                      bytes_accessed=bytes_acc),
    )(attn_emb_flat, x_stack, embedding,
      p["ln1_g"], p["ln1_b"], wq, bq, wkv, bkv, wo, bo,
      p["ln2_g"], p["ln2_b"], p["w1"], p["b1"], p["w2"], p["b2"])


# ----------------------------------------------------------------------------
# Full QFormerCatLayer forward
# ----------------------------------------------------------------------------
def qformer_cat_layer(x1, x2, embedding, p, *, num_heads, bt_max=4,
                      single_buffer_weights=True):
    B = embedding.shape[0]
    Qn = p["query_token"].shape[1]

    attn_emb = attn1_call(p["query_token"], embedding, p["attn1"],
                          num_heads=num_heads,
                          single_buffer_weights=single_buffer_weights)
    attn_emb_flat = attn_emb.reshape(B * Qn, -1)          # free contiguous reshape

    def run(stack):
        G = stack.shape[0]
        bt = _pick_bt(B, Qn, bt_max)
        out = fused_branch_call(stack, embedding, attn_emb_flat, p,
                                num_heads=num_heads, bt=bt,
                                single_buffer_weights=single_buffer_weights)
        return out.reshape(G, B, Qn, -1)

    if x1.shape == x2.shape:
        outs = run(jnp.stack([x1, x2], axis=0))           # (2, B, S, D)
        o1, o2 = outs[0], outs[1]
    else:
        o1 = run(x1[None])[0]
        o2 = run(x2[None])[0]
    return o1, o2, embedding


# ----------------------------------------------------------------------------
# Deterministic parameter initialization (synthetic, matches module shapes)
#   matmul weights stored bf16 (MXU operands); biases / LN params f32.
# ----------------------------------------------------------------------------
def init_params(key, feat_dim, query_num):
    D = feat_dim
    Dh = 2 * D
    ks = jax.random.split(key, 8)

    def normal(k, shape, scale=0.05, dtype=jnp.float32):
        return (scale * jax.random.normal(k, shape, jnp.float32)).astype(dtype)

    def attn_params(k):
        kk = jax.random.split(k, 6)
        return (normal(kk[0], (D, D), dtype=jnp.bfloat16),      # Wq  (in, out)
                normal(kk[1], (1, D)),                          # bq
                normal(kk[2], (D, 2 * D), dtype=jnp.bfloat16),  # Wkv packed [K | V]
                normal(kk[3], (1, 2 * D)),                      # bkv
                normal(kk[4], (D, D), dtype=jnp.bfloat16),      # Wo
                normal(kk[5], (1, D)))                          # bo

    return {
        "ln1_g": jnp.ones((1, D), jnp.float32),
        "ln1_b": jnp.zeros((1, D), jnp.float32),
        "ln2_g": jnp.ones((1, D), jnp.float32),
        "ln2_b": jnp.zeros((1, D), jnp.float32),
        "attn1": attn_params(ks[0]),
        "attn2": attn_params(ks[1]),
        "w1": normal(ks[2], (D, Dh), dtype=jnp.bfloat16),
        "b1": normal(ks[3], (1, Dh)),
        "w2": normal(ks[4], (Dh, D), dtype=jnp.bfloat16),
        "b2": normal(ks[5], (1, D)),
        "query_token": normal(ks[6], (1, query_num, D), scale=1.0),
    }


# ----------------------------------------------------------------------------
# Pure-JAX reference (f32) for a sanity check at bf16-level tolerance.
# ----------------------------------------------------------------------------
def _reference(x1, x2, emb, p, num_heads):
    def ln(x, g, b, eps=1e-5):
        m = x.mean(-1, keepdims=True)
        v = ((x - m) ** 2).mean(-1, keepdims=True)
        return (x - m) / jnp.sqrt(v + eps) * g + b

    def mha(q, kv, prm):
        wq, bq, wkv, bkv, wo, bo = [w.astype(jnp.float32) for w in prm]
        B, M, D = q.shape
        H = num_heads
        hd = D // H
        Q = q @ wq + bq
        K = kv @ wkv[:, :D] + bkv[:, :D]
        V = kv @ wkv[:, D:] + bkv[:, D:]

        def split(t):
            return t.reshape(t.shape[0], t.shape[1], H, hd).transpose(0, 2, 1, 3)

        s = jnp.einsum("bhqd,bhkd->bhqk", split(Q), split(K)) / jnp.sqrt(float(hd))
        a = jax.nn.softmax(s, axis=-1)
        ctx = jnp.einsum("bhqk,bhkd->bhqd", a, split(V))
        ctx = ctx.transpose(0, 2, 1, 3).reshape(B, M, D)
        return ctx @ wo + bo

    def mlp(x):
        h = x @ p["w1"].astype(jnp.float32) + p["b1"]
        h = jax.nn.gelu(h, approximate=False)
        return h @ p["w2"].astype(jnp.float32) + p["b2"]

    B = emb.shape[0]
    qtok = jnp.broadcast_to(p["query_token"], (B,) + p["query_token"].shape[1:])
    attn_emb = mha(qtok, emb, p["attn1"])

    def branch(x):
        xc = jnp.concatenate([x, emb], axis=1)
        nx = ln(xc, p["ln1_g"], p["ln1_b"])
        ax = mha(attn_emb, nx, p["attn2"])
        return mlp(ln(ax, p["ln2_g"], p["ln2_b"])) + ax

    return branch(x1), branch(x2), emb


if __name__ == "__main__":
    # small shapes consistent with the module (feat_dim, num_heads, query_num)
    B, D, H, Qn = 2, 32, 4, 8
    S1, S2, Se = 8, 8, 8

    key = jax.random.PRNGKey(0)
    k1, k2, k3, kp = jax.random.split(key, 4)
    x1 = jax.random.normal(k1, (B, S1, D), jnp.float32)
    x2 = jax.random.normal(k2, (B, S2, D), jnp.float32)
    emb = jax.random.normal(k3, (B, Se, D), jnp.float32)

    params = init_params(kp, D, Qn)

    try:
        o1, o2, oe = qformer_cat_layer(x1, x2, emb, params, num_heads=H)
        jax.block_until_ready((o1, o2, oe))
    except Exception:
        # Fallback: identical kernels with default double-buffered weight specs,
        # in case this JAX build rejects pipeline_mode=pl.Buffered(1) on inputs.
        o1, o2, oe = qformer_cat_layer(x1, x2, emb, params, num_heads=H,
                                       single_buffer_weights=False)
        jax.block_until_ready((o1, o2, oe))

    assert o1.shape == (B, Qn, D)
    assert o2.shape == (B, Qn, D)
    assert oe.shape == (B, Se, D)

    # Loose-tolerance check vs a pure-f32 JAX reference (bf16 matmuls + approx
    # reciprocal in the kernel account for the gap).
    r1, r2, _ = _reference(x1, x2, emb, params, H)
    assert jnp.allclose(o1, r1, rtol=1e-1, atol=1e-1)
    assert jnp.allclose(o2, r2, rtol=1e-1, atol=1e-1)

    print("KERNEL_OK")
</pallas_src>

<mosaic_0001>
module attributes {stable_mosaic.version = 11 : i64} {
  func.func @_attn1_kernel(%arg0: i32, %arg1: memref<1x8x32xf32, #tpu.memory_space<vmem>>, %arg2: memref<1x8x32xf32, #tpu.memory_space<vmem>>, %arg3: memref<32x32xbf16, #tpu.memory_space<vmem>>, %arg4: memref<1x32xf32, #tpu.memory_space<vmem>>, %arg5: memref<32x64xbf16, #tpu.memory_space<vmem>>, %arg6: memref<1x64xf32, #tpu.memory_space<vmem>>, %arg7: memref<32x32xbf16, #tpu.memory_space<vmem>>, %arg8: memref<1x32xf32, #tpu.memory_space<vmem>>, %arg9: memref<1x8x32xbf16, #tpu.memory_space<vmem>>) attributes {dimension_semantics = [#tpu.dimension_semantics<parallel>], iteration_bounds = array<i64: 2>, scalar_prefetch = 0 : i64, scratch_operands = 0 : i64, tpu.core_type = #tpu.core_type<tc>, window_params = [{pipeline_mode = #tpu.pipeline_mode<synchronous>, transform_indices = @transform_0, window_bounds = array<i64: 1, 8, 32>}, {transform_indices = @transform_1, window_bounds = array<i64: 1, 8, 32>}, {pipeline_mode = #tpu.pipeline_mode<synchronous>, transform_indices = @transform_2, window_bounds = array<i64: 32, 32>}, {pipeline_mode = #tpu.pipeline_mode<synchronous>, transform_indices = @transform_3, window_bounds = array<i64: 1, 32>}, {pipeline_mode = #tpu.pipeline_mode<synchronous>, transform_indices = @transform_4, window_bounds = array<i64: 32, 64>}, {pipeline_mode = #tpu.pipeline_mode<synchronous>, transform_indices = @transform_5, window_bounds = array<i64: 1, 64>}, {pipeline_mode = #tpu.pipeline_mode<synchronous>, transform_indices = @transform_6, window_bounds = array<i64: 32, 32>}, {pipeline_mode = #tpu.pipeline_mode<synchronous>, transform_indices = @transform_7, window_bounds = array<i64: 1, 32>}, {transform_indices = @transform_8, window_bounds = array<i64: 1, 8, 32>}]} {
    %c0 = arith.constant 0 : index
    %c0_0 = arith.constant 0 : index
    %c0_1 = arith.constant 0 : index
    %0 = vector.load %arg1[%c0, %c0_0, %c0_1] : memref<1x8x32xf32, #tpu.memory_space<vmem>>, vector<1x8x32xf32>
    %1 = vector.shape_cast %0 : vector<1x8x32xf32> to vector<8x32xf32>
    %2 = arith.truncf %1 : vector<8x32xf32> to vector<8x32xbf16>
    %c0_2 = arith.constant 0 : index
    %c0_3 = arith.constant 0 : index
    %c0_4 = arith.constant 0 : index
    %3 = vector.load %arg2[%c0_2, %c0_3, %c0_4] : memref<1x8x32xf32, #tpu.memory_space<vmem>>, vector<1x8x32xf32>
    %4 = vector.shape_cast %3 : vector<1x8x32xf32> to vector<8x32xf32>
    %5 = arith.truncf %4 : vector<8x32xf32> to vector<8x32xbf16>
    %c0_5 = arith.constant 0 : index
    %c0_6 = arith.constant 0 : index
    %6 = vector.load %arg3[%c0_5, %c0_6] : memref<32x32xbf16, #tpu.memory_space<vmem>>, vector<32x32xbf16>
    %cst = arith.constant dense<0.000000e+00> : vector<8x32xf32>
    %7 = tpu.matmul %2, %6, %cst {dimension_numbers = #tpu.dot_dimension_numbers<[1], [0], [0], [1], [0, 0, 1, 1], [], []>} : vector<8x32xbf16>, vector<32x32xbf16>, vector<8x32xf32> -> vector<8x32xf32>
    %c0_7 = arith.constant 0 : index
    %c0_8 = arith.constant 0 : index
    %8 = vector.load %arg4[%c0_7, %c0_8] : memref<1x32xf32, #tpu.memory_space<vmem>>, vector<1x32xf32>
    %9 = vector.broadcast %8 : vector<1x32xf32> to vector<8x32xf32>
    %10 = arith.addf %7, %9 : vector<8x32xf32>
    %c0_9 = arith.constant 0 : index
    %c0_10 = arith.constant 0 : index
    %11 = vector.load %arg5[%c0_9, %c0_10] : memref<32x64xbf16, #tpu.memory_space<vmem>>, vector<32x64xbf16>
    %cst_11 = arith.constant dense<0.000000e+00> : vector<8x64xf32>
    %12 = tpu.matmul %5, %11, %cst_11 {dimension_numbers = #tpu.dot_dimension_numbers<[1], [0], [0], [1], [0, 0, 1, 1], [], []>} : vector<8x32xbf16>, vector<32x64xbf16>, vector<8x64xf32> -> vector<8x64xf32>
    %c0_12 = arith.constant 0 : index
    %c0_13 = arith.constant 0 : index
    %13 = vector.load %arg6[%c0_12, %c0_13] : memref<1x64xf32, #tpu.memory_space<vmem>>, vector<1x64xf32>
    %14 = vector.broadcast %13 : vector<1x64xf32> to vector<8x64xf32>
    %15 = arith.addf %12, %14 : vector<8x64xf32>
    %16 = arith.truncf %10 : vector<8x32xf32> to vector<8x32xbf16>
    %17 = arith.truncf %15 : vector<8x64xf32> to vector<8x64xbf16>
    %18 = vector.extract_strided_slice %16 {offsets = [0, 0], sizes = [8, 8], strides = [1, 1]} : vector<8x32xbf16> to vector<8x8xbf16>
    %19 = vector.extract_strided_slice %17 {offsets = [0, 0], sizes = [8, 8], strides = [1, 1]} : vector<8x64xbf16> to vector<8x8xbf16>
    %20 = vector.extract_strided_slice %17 {offsets = [0, 32], sizes = [8, 8], strides = [1, 1]} : vector<8x64xbf16> to vector<8x8xbf16>
    %cst_14 = arith.constant dense<0.000000e+00> : vector<8x8xf32>
    %21 = tpu.matmul %18, %19, %cst_14 {dimension_numbers = #tpu.dot_dimension_numbers<[1], [1], [0], [0], [0, 0, 1, 0], [], []>} : vector<8x8xbf16>, vector<8x8xbf16>, vector<8x8xf32> -> vector<8x8xf32>
    %cst_15 = arith.constant 0.353553385 : f32
    %22 = vector.broadcast %cst_15 : f32 to vector<8x8xf32>
    %23 = arith.mulf %21, %22 : vector<8x8xf32>
    %cst_16 = arith.constant dense<0xFF800000> : vector<8xf32>
    %24 = vector.multi_reduction <maximumf>, %23, %cst_16 [1] : vector<8x8xf32> to vector<8xf32>
    %25 = vector.shape_cast %24 : vector<8xf32> to vector<8x1xf32>
    %26 = vector.broadcast %25 : vector<8x1xf32> to vector<8x8xf32>
    %27 = arith.subf %23, %26 : vector<8x8xf32>
    %28 = math.exp %27 : vector<8x8xf32>
    %cst_17 = arith.constant dense<0.000000e+00> : vector<8xf32>
    %29 = vector.multi_reduction <add>, %28, %cst_17 [1] : vector<8x8xf32> to vector<8xf32>
    %30 = vector.shape_cast %29 : vector<8xf32> to vector<8x1xf32>
    %31 = tpu.reciprocal %30 {approx = true} : vector<8x1xf32> -> vector<8x1xf32>
    %32 = vector.broadcast %31 : vector<8x1xf32> to vector<8x8xf32>
    %33 = arith.mulf %28, %32 : vector<8x8xf32>
    %34 = arith.truncf %33 : vector<8x8xf32> to vector<8x8xbf16>
    %cst_18 = arith.constant dense<0.000000e+00> : vector<8x8xf32>
    %35 = tpu.matmul %34, %20, %cst_18 {dimension_numbers = #tpu.dot_dimension_numbers<[1], [0], [0], [1], [0, 0, 1, 1], [], []>} : vector<8x8xbf16>, vector<8x8xbf16>, vector<8x8xf32> -> vector<8x8xf32>
    %36 = vector.extract_strided_slice %16 {offsets = [0, 8], sizes = [8, 8], strides = [1, 1]} : vector<8x32xbf16> to vector<8x8xbf16>
    %37 = vector.extract_strided_slice %17 {offsets = [0, 8], sizes = [8, 8], strides = [1, 1]} : vector<8x64xbf16> to vector<8x8xbf16>
    %38 = vector.extract_strided_slice %17 {offsets = [0, 40], sizes = [8, 8], strides = [1, 1]} : vector<8x64xbf16> to vector<8x8xbf16>
    %cst_19 = arith.constant dense<0.000000e+00> : vector<8x8xf32>
    %39 = tpu.matmul %36, %37, %cst_19 {dimension_numbers = #tpu.dot_dimension_numbers<[1], [1], [0], [0], [0, 0, 1, 0], [], []>} : vector<8x8xbf16>, vector<8x8xbf16>, vector<8x8xf32> -> vector<8x8xf32>
    %cst_20 = arith.constant 0.353553385 : f32
    %40 = vector.broadcast %cst_20 : f32 to vector<8x8xf32>
    %41 = arith.mulf %39, %40 : vector<8x8xf32>
    %cst_21 = arith.constant dense<0xFF800000> : vector<8xf32>
    %42 = vector.multi_reduction <maximumf>, %41, %cst_21 [1] : vector<8x8xf32> to vector<8xf32>
    %43 = vector.shape_cast %42 : vector<8xf32> to vector<8x1xf32>
    %44 = vector.broadcast %43 : vector<8x1xf32> to vector<8x8xf32>
    %45 = arith.subf %41, %44 : vector<8x8xf32>
    %46 = math.exp %45 : vector<8x8xf32>
    %cst_22 = arith.constant dense<0.000000e+00> : vector<8xf32>
    %47 = vector.multi_reduction <add>, %46, %cst_22 [1] : vector<8x8xf32> to vector<8xf32>
    %48 = vector.shape_cast %47 : vector<8xf32> to vector<8x1xf32>
    %49 = tpu.reciprocal %48 {approx = true} : vector<8x1xf32> -> vector<8x1xf32>
    %50 = vector.broadcast %49 : vector<8x1xf32> to vector<8x8xf32>
    %51 = arith.mulf %46, %50 : vector<8x8xf32>
    %52 = arith.truncf %51 : vector<8x8xf32> to vector<8x8xbf16>
    %cst_23 = arith.constant dense<0.000000e+00> : vector<8x8xf32>
    %53 = tpu.matmul %52, %38, %cst_23 {dimension_numbers = #tpu.dot_dimension_numbers<[1], [0], [0], [1], [0, 0, 1, 1], [], []>} : vector<8x8xbf16>, vector<8x8xbf16>, vector<8x8xf32> -> vector<8x8xf32>
    %54 = vector.extract_strided_slice %16 {offsets = [0, 16], sizes = [8, 8], strides = [1, 1]} : vector<8x32xbf16> to vector<8x8xbf16>
    %55 = vector.extract_strided_slice %17 {offsets = [0, 16], sizes = [8, 8], strides = [1, 1]} : vector<8x64xbf16> to vector<8x8xbf16>
    %56 = vector.extract_strided_slice %17 {offsets = [0, 48], sizes = [8, 8], strides = [1, 1]} : vector<8x64xbf16> to vector<8x8xbf16>
    %cst_24 = arith.constant dense<0.000000e+00> : vector<8x8xf32>
    %57 = tpu.matmul %54, %55, %cst_24 {dimension_numbers = #tpu.dot_dimension_numbers<[1], [1], [0], [0], [0, 0, 1, 0], [], []>} : vector<8x8xbf16>, vector<8x8xbf16>, vector<8x8xf32> -> vector<8x8xf32>
    %cst_25 = arith.constant 0.353553385 : f32
    %58 = vector.broadcast %cst_25 : f32 to vector<8x8xf32>
    %59 = arith.mulf %57, %58 : vector<8x8xf32>
    %cst_26 = arith.constant dense<0xFF800000> : vector<8xf32>
    %60 = vector.multi_reduction <maximumf>, %59, %cst_26 [1] : vector<8x8xf32> to vector<8xf32>
    %61 = vector.shape_cast %60 : vector<8xf32> to vector<8x1xf32>
    %62 = vector.broadcast %61 : vector<8x1xf32> to vector<8x8xf32>
    %63 = arith.subf %59, %62 : vector<8x8xf32>
    %64 = math.exp %63 : vector<8x8xf32>
    %cst_27 = arith.constant dense<0.000000e+00> : vector<8xf32>
    %65 = vector.multi_reduction <add>, %64, %cst_27 [1] : vector<8x8xf32> to vector<8xf32>
    %66 = vector.shape_cast %65 : vector<8xf32> to vector<8x1xf32>
    %67 = tpu.reciprocal %66 {approx = true} : vector<8x1xf32> -> vector<8x1xf32>
    %68 = vector.broadcast %67 : vector<8x1xf32> to vector<8x8xf32>
    %69 = arith.mulf %64, %68 : vector<8x8xf32>
    %70 = arith.truncf %69 : vector<8x8xf32> to vector<8x8xbf16>
    %cst_28 = arith.constant dense<0.000000e+00> : vector<8x8xf32>
    %71 = tpu.matmul %70, %56, %cst_28 {dimension_numbers = #tpu.dot_dimension_numbers<[1], [0], [0], [1], [0, 0, 1, 1], [], []>} : vector<8x8xbf16>, vector<8x8xbf16>, vector<8x8xf32> -> vector<8x8xf32>
    %72 = vector.extract_strided_slice %16 {offsets = [0, 24], sizes = [8, 8], strides = [1, 1]} : vector<8x32xbf16> to vector<8x8xbf16>
    %73 = vector.extract_strided_slice %17 {offsets = [0, 24], sizes = [8, 8], strides = [1, 1]} : vector<8x64xbf16> to vector<8x8xbf16>
    %74 = vector.extract_strided_slice %17 {offsets = [0, 56], sizes = [8, 8], strides = [1, 1]} : vector<8x64xbf16> to vector<8x8xbf16>
    %cst_29 = arith.constant dense<0.000000e+00> : vector<8x8xf32>
    %75 = tpu.matmul %72, %73, %cst_29 {dimension_numbers = #tpu.dot_dimension_numbers<[1], [1], [0], [0], [0, 0, 1, 0], [], []>} : vector<8x8xbf16>, vector<8x8xbf16>, vector<8x8xf32> -> vector<8x8xf32>
    %cst_30 = arith.constant 0.353553385 : f32
    %76 = vector.broadcast %cst_30 : f32 to vector<8x8xf32>
    %77 = arith.mulf %75, %76 : vector<8x8xf32>
    %cst_31 = arith.constant dense<0xFF800000> : vector<8xf32>
    %78 = vector.multi_reduction <maximumf>, %77, %cst_31 [1] : vector<8x8xf32> to vector<8xf32>
    %79 = vector.shape_cast %78 : vector<8xf32> to vector<8x1xf32>
    %80 = vector.broadcast %79 : vector<8x1xf32> to vector<8x8xf32>
    %81 = arith.subf %77, %80 : vector<8x8xf32>
    %82 = math.exp %81 : vector<8x8xf32>
    %cst_32 = arith.constant dense<0.000000e+00> : vector<8xf32>
    %83 = vector.multi_reduction <add>, %82, %cst_32 [1] : vector<8x8xf32> to vector<8xf32>
    %84 = vector.shape_cast %83 : vector<8xf32> to vector<8x1xf32>
    %85 = tpu.reciprocal %84 {approx = true} : vector<8x1xf32> -> vector<8x1xf32>
    %86 = vector.broadcast %85 : vector<8x1xf32> to vector<8x8xf32>
    %87 = arith.mulf %82, %86 : vector<8x8xf32>
    %88 = arith.truncf %87 : vector<8x8xf32> to vector<8x8xbf16>
    %cst_33 = arith.constant dense<0.000000e+00> : vector<8x8xf32>
    %89 = tpu.matmul %88, %74, %cst_33 {dimension_numbers = #tpu.dot_dimension_numbers<[1], [0], [0], [1], [0, 0, 1, 1], [], []>} : vector<8x8xbf16>, vector<8x8xbf16>, vector<8x8xf32> -> vector<8x8xf32>
    %90 = tpu.concatenate %35, %53, %71, %89 in 1 : vector<8x8xf32>, vector<8x8xf32>, vector<8x8xf32>, vector<8x8xf32> -> vector<8x32xf32>
    %91 = arith.truncf %90 : vector<8x32xf32> to vector<8x32xbf16>
    %c0_34 = arith.constant 0 : index
    %c0_35 = arith.constant 0 : index
    %92 = vector.load %arg7[%c0_34, %c0_35] : memref<32x32xbf16, #tpu.memory_space<vmem>>, vector<32x32xbf16>
    %cst_36 = arith.constant dense<0.000000e+00> : vector<8x32xf32>
    %93 = tpu.matmul %91, %92, %cst_36 {dimension_numbers = #tpu.dot_dimension_numbers<[1], [0], [0], [1], [0, 0, 1, 1], [], []>} : vector<8x32xbf16>, vector<32x32xbf16>, vector<8x32xf32> -> vector<8x32xf32>
    %c0_37 = arith.constant 0 : index
    %c0_38 = arith.constant 0 : index
    %94 = vector.load %arg8[%c0_37, %c0_38] : memref<1x32xf32, #tpu.memory_space<vmem>>, vector<1x32xf32>
    %95 = vector.broadcast %94 : vector<1x32xf32> to vector<8x32xf32>
    %96 = arith.addf %93, %95 : vector<8x32xf32>
    %97 = arith.truncf %96 : vector<8x32xf32> to vector<8x32xbf16>
    %c0_39 = arith.constant 0 : index
    %c0_40 = arith.constant 0 : index
    %c0_41 = arith.constant 0 : index
    %98 = vector.load %arg9[%c0_39, %c0_40, %c0_41] : memref<1x8x32xbf16, #tpu.memory_space<vmem>>, vector<1x8x32xbf16>
    %99 = vector.shape_cast %98 : vector<1x8x32xbf16> to vector<8x32xbf16>
    %100 = vector.shape_cast %97 : vector<8x32xbf16> to vector<1x8x32xbf16>
    tpu.vector_store %arg9[%c0_39, %c0_40, %c0_41], %100 {strides = array<i32>} : memref<1x8x32xbf16, #tpu.memory_space<vmem>>, vector<1x8x32xbf16>,
    return
  }
  func.func @transform_0(%arg0: i32) -> (i32, i32, i32) {
    %c0_i32 = arith.constant 0 : i32
    %c0_i32_0 = arith.constant 0 : i32
    %c0_i32_1 = arith.constant 0 : i32
    %c0_i32_2 = arith.constant 0 : i32
    return %c0_i32, %c0_i32_0, %c0_i32_1 : i32, i32, i32
  }
  func.func @transform_1(%arg0: i32) -> (i32, i32, i32) {
    %c0_i32 = arith.constant 0 : i32
    %c0_i32_0 = arith.constant 0 : i32
    %c0_i32_1 = arith.constant 0 : i32
    return %arg0, %c0_i32, %c0_i32_0 : i32, i32, i32
  }
  func.func @transform_2(%arg0: i32) -> (i32, i32) {
    %c0_i32 = arith.constant 0 : i32
    %c0_i32_0 = arith.constant 0 : i32
    %c0_i32_1 = arith.constant 0 : i32
    return %c0_i32, %c0_i32_0 : i32, i32
  }
  func.func @transform_3(%arg0: i32) -> (i32, i32) {
    %c0_i32 = arith.constant 0 : i32
    %c0_i32_0 = arith.constant 0 : i32
    %c0_i32_1 = arith.constant 0 : i32
    return %c0_i32, %c0_i32_0 : i32, i32
  }
  func.func @transform_4(%arg0: i32) -> (i32, i32) {
    %c0_i32 = arith.constant 0 : i32
    %c0_i32_0 = arith.constant 0 : i32
    %c0_i32_1 = arith.constant 0 : i32
    return %c0_i32, %c0_i32_0 : i32, i32
  }
  func.func @transform_5(%arg0: i32) -> (i32, i32) {
    %c0_i32 = arith.constant 0 : i32
    %c0_i32_0 = arith.constant 0 : i32
    %c0_i32_1 = arith.constant 0 : i32
    return %c0_i32, %c0_i32_0 : i32, i32
  }
  func.func @transform_6(%arg0: i32) -> (i32, i32) {
    %c0_i32 = arith.constant 0 : i32
    %c0_i32_0 = arith.constant 0 : i32
    %c0_i32_1 = arith.constant 0 : i32
    return %c0_i32, %c0_i32_0 : i32, i32
  }
  func.func @transform_7(%arg0: i32) -> (i32, i32) {
    %c0_i32 = arith.constant 0 : i32
    %c0_i32_0 = arith.constant 0 : i32
    %c0_i32_1 = arith.constant 0 : i32
    return %c0_i32, %c0_i32_0 : i32, i32
  }
  func.func @transform_8(%arg0: i32) -> (i32, i32, i32) {
    %c0_i32 = arith.constant 0 : i32
    %c0_i32_0 = arith.constant 0 : i32
    %c0_i32_1 = arith.constant 0 : i32
    return %arg0, %c0_i32, %c0_i32_0 : i32, i32, i32
  }
}

module attributes {stable_mosaic.version = 11 : i64} {
  func.func @_attn1_kernel(%arg0: i32, %arg1: memref<1x8x32xf32, #tpu.memory_space<vmem>>, %arg2: memref<1x8x32xf32, #tpu.memory_space<vmem>>, %arg3: memref<32x32xbf16, #tpu.memory_space<vmem>>, %arg4: memref<1x32xf32, #tpu.memory_space<vmem>>, %arg5: memref<32x64xbf16, #tpu.memory_space<vmem>>, %arg6: memref<1x64xf32, #tpu.memory_space<vmem>>, %arg7: memref<32x32xbf16, #tpu.memory_space<vmem>>, %arg8: memref<1x32xf32, #tpu.memory_space<vmem>>, %arg9: memref<1x8x32xbf16, #tpu.memory_space<vmem>>) attributes {dimension_semantics = [#tpu.dimension_semantics<parallel>], iteration_bounds = array<i64: 2>, scalar_prefetch = 0 : i64, scratch_operands = 0 : i64, tpu.core_type = #tpu.core_type<tc>, window_params = [{pipeline_mode = #tpu.pipeline_mode<synchronous>, transform_indices = @transform_0, window_bounds = array<i64: 1, 8, 32>}, {transform_indices = @transform_1, window_bounds = array<i64: 1, 8, 32>}, {pipeline_mode = #tpu.pipeline_mode<synchronous>, transform_indices = @transform_2, window_bounds = array<i64: 32, 32>}, {pipeline_mode = #tpu.pipeline_mode<synchronous>, transform_indices = @transform_3, window_bounds = array<i64: 1, 32>}, {pipeline_mode = #tpu.pipeline_mode<synchronous>, transform_indices = @transform_4, window_bounds = array<i64: 32, 64>}, {pipeline_mode = #tpu.pipeline_mode<synchronous>, transform_indices = @transform_5, window_bounds = array<i64: 1, 64>}, {pipeline_mode = #tpu.pipeline_mode<synchronous>, transform_indices = @transform_6, window_bounds = array<i64: 32, 32>}, {pipeline_mode = #tpu.pipeline_mode<synchronous>, transform_indices = @transform_7, window_bounds = array<i64: 1, 32>}, {transform_indices = @transform_8, window_bounds = array<i64: 1, 8, 32>}]} {
    %c0 = arith.constant 0 : index
    %c0_0 = arith.constant 0 : index
    %c0_1 = arith.constant 0 : index
    %0 = vector.load %arg1[%c0, %c0_0, %c0_1] : memref<1x8x32xf32, #tpu.memory_space<vmem>>, vector<1x8x32xf32>
    %1 = vector.shape_cast %0 : vector<1x8x32xf32> to vector<8x32xf32>
    %2 = arith.truncf %1 : vector<8x32xf32> to vector<8x32xbf16>
    %c0_2 = arith.constant 0 : index
    %c0_3 = arith.constant 0 : index
    %c0_4 = arith.constant 0 : index
    %3 = vector.load %arg2[%c0_2, %c0_3, %c0_4] : memref<1x8x32xf32, #tpu.memory_space<vmem>>, vector<1x8x32xf32>
    %4 = vector.shape_cast %3 : vector<1x8x32xf32> to vector<8x32xf32>
    %5 = arith.truncf %4 : vector<8x32xf32> to vector<8x32xbf16>
    %c0_5 = arith.constant 0 : index
    %c0_6 = arith.constant 0 : index
    %6 = vector.load %arg3[%c0_5, %c0_6] : memref<32x32xbf16, #tpu.memory_space<vmem>>, vector<32x32xbf16>
    %cst = arith.constant dense<0.000000e+00> : vector<8x32xf32>
    %7 = tpu.matmul %2, %6, %cst {dimension_numbers = #tpu.dot_dimension_numbers<[1], [0], [0], [1], [0, 0, 1, 1], [], []>} : vector<8x32xbf16>, vector<32x32xbf16>, vector<8x32xf32> -> vector<8x32xf32>
    %c0_7 = arith.constant 0 : index
    %c0_8 = arith.constant 0 : index
    %8 = vector.load %arg4[%c0_7, %c0_8] : memref<1x32xf32, #tpu.memory_space<vmem>>, vector<1x32xf32>
    %9 = vector.broadcast %8 : vector<1x32xf32> to vector<8x32xf32>
    %10 = arith.addf %7, %9 : vector<8x32xf32>
    %c0_9 = arith.constant 0 : index
    %c0_10 = arith.constant 0 : index
    %11 = vector.load %arg5[%c0_9, %c0_10] : memref<32x64xbf16, #tpu.memory_space<vmem>>, vector<32x64xbf16>
    %cst_11 = arith.constant dense<0.000000e+00> : vector<8x64xf32>
    %12 = tpu.matmul %5, %11, %cst_11 {dimension_numbers = #tpu.dot_dimension_numbers<[1], [0], [0], [1], [0, 0, 1, 1], [], []>} : vector<8x32xbf16>, vector<32x64xbf16>, vector<8x64xf32> -> vector<8x64xf32>
    %c0_12 = arith.constant 0 : index
    %c0_13 = arith.constant 0 : index
    %13 = vector.load %arg6[%c0_12, %c0_13] : memref<1x64xf32, #tpu.memory_space<vmem>>, vector<1x64xf32>
    %14 = vector.broadcast %13 : vector<1x64xf32> to vector<8x64xf32>
    %15 = arith.addf %12, %14 : vector<8x64xf32>
    %16 = arith.truncf %10 : vector<8x32xf32> to vector<8x32xbf16>
    %17 = arith.truncf %15 : vector<8x64xf32> to vector<8x64xbf16>
    %18 = vector.extract_strided_slice %16 {offsets = [0, 0], sizes = [8, 8], strides = [1, 1]} : vector<8x32xbf16> to vector<8x8xbf16>
    %19 = vector.extract_strided_slice %17 {offsets = [0, 0], sizes = [8, 8], strides = [1, 1]} : vector<8x64xbf16> to vector<8x8xbf16>
    %20 = vector.extract_strided_slice %17 {offsets = [0, 32], sizes = [8, 8], strides = [1, 1]} : vector<8x64xbf16> to vector<8x8xbf16>
    %cst_14 = arith.constant dense<0.000000e+00> : vector<8x8xf32>
    %21 = tpu.matmul %18, %19, %cst_14 {dimension_numbers = #tpu.dot_dimension_numbers<[1], [1], [0], [0], [0, 0, 1, 0], [], []>} : vector<8x8xbf16>, vector<8x8xbf16>, vector<8x8xf32> -> vector<8x8xf32>
    %cst_15 = arith.constant 0.353553385 : f32
    %22 = vector.broadcast %cst_15 : f32 to vector<8x8xf32>
    %23 = arith.mulf %21, %22 : vector<8x8xf32>
    %cst_16 = arith.constant dense<0xFF800000> : vector<8xf32>
    %24 = vector.multi_reduction <maximumf>, %23, %cst_16 [1] : vector<8x8xf32> to vector<8xf32>
    %25 = vector.shape_cast %24 : vector<8xf32> to vector<8x1xf32>
    %26 = vector.broadcast %25 : vector<8x1xf32> to vector<8x8xf32>
    %27 = arith.subf %23, %26 : vector<8x8xf32>
    %28 = math.exp %27 : vector<8x8xf32>
    %cst_17 = arith.constant dense<0.000000e+00> : vector<8xf32>
    %29 = vector.multi_reduction <add>, %28, %cst_17 [1] : vector<8x8xf32> to vector<8xf32>
    %30 = vector.shape_cast %29 : vector<8xf32> to vector<8x1xf32>
    %31 = tpu.reciprocal %30 {approx = true} : vector<8x1xf32> -> vector<8x1xf32>
    %32 = vector.broadcast %31 : vector<8x1xf32> to vector<8x8xf32>
    %33 = arith.mulf %28, %32 : vector<8x8xf32>
    %34 = arith.truncf %33 : vector<8x8xf32> to vector<8x8xbf16>
    %cst_18 = arith.constant dense<0.000000e+00> : vector<8x8xf32>
    %35 = tpu.matmul %34, %20, %cst_18 {dimension_numbers = #tpu.dot_dimension_numbers<[1], [0], [0], [1], [0, 0, 1, 1], [], []>} : vector<8x8xbf16>, vector<8x8xbf16>, vector<8x8xf32> -> vector<8x8xf32>
    %36 = vector.extract_strided_slice %16 {offsets = [0, 8], sizes = [8, 8], strides = [1, 1]} : vector<8x32xbf16> to vector<8x8xbf16>
    %37 = vector.extract_strided_slice %17 {offsets = [0, 8], sizes = [8, 8], strides = [1, 1]} : vector<8x64xbf16> to vector<8x8xbf16>
    %38 = vector.extract_strided_slice %17 {offsets = [0, 40], sizes = [8, 8], strides = [1, 1]} : vector<8x64xbf16> to vector<8x8xbf16>
    %cst_19 = arith.constant dense<0.000000e+00> : vector<8x8xf32>
    %39 = tpu.matmul %36, %37, %cst_19 {dimension_numbers = #tpu.dot_dimension_numbers<[1], [1], [0], [0], [0, 0, 1, 0], [], []>} : vector<8x8xbf16>, vector<8x8xbf16>, vector<8x8xf32> -> vector<8x8xf32>
    %cst_20 = arith.constant 0.353553385 : f32
    %40 = vector.broadcast %cst_20 : f32 to vector<8x8xf32>
    %41 = arith.mulf %39, %40 : vector<8x8xf32>
    %cst_21 = arith.constant dense<0xFF800000> : vector<8xf32>
    %42 = vector.multi_reduction <maximumf>, %41, %cst_21 [1] : vector<8x8xf32> to vector<8xf32>
    %43 = vector.shape_cast %42 : vector<8xf32> to vector<8x1xf32>
    %44 = vector.broadcast %43 : vector<8x1xf32> to vector<8x8xf32>
    %45 = arith.subf %41, %44 : vector<8x8xf32>
    %46 = math.exp %45 : vector<8x8xf32>
    %cst_22 = arith.constant dense<0.000000e+00> : vector<8xf32>
    %47 = vector.multi_reduction <add>, %46, %cst_22 [1] : vector<8x8xf32> to vector<8xf32>
    %48 = vector.shape_cast %47 : vector<8xf32> to vector<8x1xf32>
    %49 = tpu.reciprocal %48 {approx = true} : vector<8x1xf32> -> vector<8x1xf32>
    %50 = vector.broadcast %49 : vector<8x1xf32> to vector<8x8xf32>
    %51 = arith.mulf %46, %50 : vector<8x8xf32>
    %52 = arith.truncf %51 : vector<8x8xf32> to vector<8x8xbf16>
    %cst_23 = arith.constant dense<0.000000e+00> : vector<8x8xf32>
    %53 = tpu.matmul %52, %38, %cst_23 {dimension_numbers = #tpu.dot_dimension_numbers<[1], [0], [0], [1], [0, 0, 1, 1], [], []>} : vector<8x8xbf16>, vector<8x8xbf16>, vector<8x8xf32> -> vector<8x8xf32>
    %54 = vector.extract_strided_slice %16 {offsets = [0, 16], sizes = [8, 8], strides = [1, 1]} : vector<8x32xbf16> to vector<8x8xbf16>
    %55 = vector.extract_strided_slice %17 {offsets = [0, 16], sizes = [8, 8], strides = [1, 1]} : vector<8x64xbf16> to vector<8x8xbf16>
    %56 = vector.extract_strided_slice %17 {offsets = [0, 48], sizes = [8, 8], strides = [1, 1]} : vector<8x64xbf16> to vector<8x8xbf16>
    %cst_24 = arith.constant dense<0.000000e+00> : vector<8x8xf32>
    %57 = tpu.matmul %54, %55, %cst_24 {dimension_numbers = #tpu.dot_dimension_numbers<[1], [1], [0], [0], [0, 0, 1, 0], [], []>} : vector<8x8xbf16>, vector<8x8xbf16>, vector<8x8xf32> -> vector<8x8xf32>
    %cst_25 = arith.constant 0.353553385 : f32
    %58 = vector.broadcast %cst_25 : f32 to vector<8x8xf32>
    %59 = arith.mulf %57, %58 : vector<8x8xf32>
    %cst_26 = arith.constant dense<0xFF800000> : vector<8xf32>
    %60 = vector.multi_reduction <maximumf>, %59, %cst_26 [1] : vector<8x8xf32> to vector<8xf32>
    %61 = vector.shape_cast %60 : vector<8xf32> to vector<8x1xf32>
    %62 = vector.broadcast %61 : vector<8x1xf32> to vector<8x8xf32>
    %63 = arith.subf %59, %62 : vector<8x8xf32>
    %64 = math.exp %63 : vector<8x8xf32>
    %cst_27 = arith.constant dense<0.000000e+00> : vector<8xf32>
    %65 = vector.multi_reduction <add>, %64, %cst_27 [1] : vector<8x8xf32> to vector<8xf32>
    %66 = vector.shape_cast %65 : vector<8xf32> to vector<8x1xf32>
    %67 = tpu.reciprocal %66 {approx = true} : vector<8x1xf32> -> vector<8x1xf32>
    %68 = vector.broadcast %67 : vector<8x1xf32> to vector<8x8xf32>
    %69 = arith.mulf %64, %68 : vector<8x8xf32>
    %70 = arith.truncf %69 : vector<8x8xf32> to vector<8x8xbf16>
    %cst_28 = arith.constant dense<0.000000e+00> : vector<8x8xf32>
    %71 = tpu.matmul %70, %56, %cst_28 {dimension_numbers = #tpu.dot_dimension_numbers<[1], [0], [0], [1], [0, 0, 1, 1], [], []>} : vector<8x8xbf16>, vector<8x8xbf16>, vector<8x8xf32> -> vector<8x8xf32>
    %72 = vector.extract_strided_slice %16 {offsets = [0, 24], sizes = [8, 8], strides = [1, 1]} : vector<8x32xbf16> to vector<8x8xbf16>
    %73 = vector.extract_strided_slice %17 {offsets = [0, 24], sizes = [8, 8], strides = [1, 1]} : vector<8x64xbf16> to vector<8x8xbf16>
    %74 = vector.extract_strided_slice %17 {offsets = [0, 56], sizes = [8, 8], strides = [1, 1]} : vector<8x64xbf16> to vector<8x8xbf16>
    %cst_29 = arith.constant dense<0.000000e+00> : vector<8x8xf32>
    %75 = tpu.matmul %72, %73, %cst_29 {dimension_numbers = #tpu.dot_dimension_numbers<[1], [1], [0], [0], [0, 0, 1, 0], [], []>} : vector<8x8xbf16>, vector<8x8xbf16>, vector<8x8xf32> -> vector<8x8xf32>
    %cst_30 = arith.constant 0.353553385 : f32
    %76 = vector.broadcast %cst_30 : f32 to vector<8x8xf32>
    %77 = arith.mulf %75, %76 : vector<8x8xf32>
    %cst_31 = arith.constant dense<0xFF800000> : vector<8xf32>
    %78 = vector.multi_reduction <maximumf>, %77, %cst_31 [1] : vector<8x8xf32> to vector<8xf32>
    %79 = vector.shape_cast %78 : vector<8xf32> to vector<8x1xf32>
    %80 = vector.broadcast %79 : vector<8x1xf32> to vector<8x8xf32>
    %81 = arith.subf %77, %80 : vector<8x8xf32>
    %82 = math.exp %81 : vector<8x8xf32>
    %cst_32 = arith.constant dense<0.000000e+00> : vector<8xf32>
    %83 = vector.multi_reduction <add>, %82, %cst_32 [1] : vector<8x8xf32> to vector<8xf32>
    %84 = vector.shape_cast %83 : vector<8xf32> to vector<8x1xf32>
    %85 = tpu.reciprocal %84 {approx = true} : vector<8x1xf32> -> vector<8x1xf32>
    %86 = vector.broadcast %85 : vector<8x1xf32> to vector<8x8xf32>
    %87 = arith.mulf %82, %86 : vector<8x8xf32>
    %88 = arith.truncf %87 : vector<8x8xf32> to vector<8x8xbf16>
    %cst_33 = arith.constant dense<0.000000e+00> : vector<8x8xf32>
    %89 = tpu.matmul %88, %74, %cst_33 {dimension_numbers = #tpu.dot_dimension_numbers<[1], [0], [0], [1], [0, 0, 1, 1], [], []>} : vector<8x8xbf16>, vector<8x8xbf16>, vector<8x8xf32> -> vector<8x8xf32>
    %90 = tpu.concatenate %35, %53, %71, %89 in 1 : vector<8x8xf32>, vector<8x8xf32>, vector<8x8xf32>, vector<8x8xf32> -> vector<8x32xf32>
    %91 = arith.truncf %90 : vector<8x32xf32> to vector<8x32xbf16>
    %c0_34 = arith.constant 0 : index
    %c0_35 = arith.constant 0 : index
    %92 = vector.load %arg7[%c0_34, %c0_35] : memref<32x32xbf16, #tpu.memory_space<vmem>>, vector<32x32xbf16>
    %cst_36 = arith.constant dense<0.000000e+00> : vector<8x32xf32>
    %93 = tpu.matmul %91, %92, %cst_36 {dimension_numbers = #tpu.dot_dimension_numbers<[1], [0], [0], [1], [0, 0, 1, 1], [], []>} : vector<8x32xbf16>, vector<32x32xbf16>, vector<8x32xf32> -> vector<8x32xf32>
    %c0_37 = arith.constant 0 : index
    %c0_38 = arith.constant 0 : index
    %94 = vector.load %arg8[%c0_37, %c0_38] : memref<1x32xf32, #tpu.memory_space<vmem>>, vector<1x32xf32>
    %95 = vector.broadcast %94 : vector<1x32xf32> to vector<8x32xf32>
    %96 = arith.addf %93, %95 : vector<8x32xf32>
    %97 = arith.truncf %96 : vector<8x32xf32> to vector<8x32xbf16>
    %c0_39 = arith.constant 0 : index
    %c0_40 = arith.constant 0 : index
    %c0_41 = arith.constant 0 : index
    %98 = vector.load %arg9[%c0_39, %c0_40, %c0_41] : memref<1x8x32xbf16, #tpu.memory_space<vmem>>, vector<1x8x32xbf16>
    %99 = vector.shape_cast %98 : vector<1x8x32xbf16> to vector<8x32xbf16>
    %100 = vector.shape_cast %97 : vector<8x32xbf16> to vector<1x8x32xbf16>
    tpu.vector_store %arg9[%c0_39, %c0_40, %c0_41], %100 {strides = array<i32>} : memref<1x8x32xbf16, #tpu.memory_space<vmem>>, vector<1x8x32xbf16>,
    return
  }
  func.func @transform_0(%arg0: i32) -> (i32, i32, i32) {
    %c0_i32 = arith.constant 0 : i32
    %c0_i32_0 = arith.constant 0 : i32
    %c0_i32_1 = arith.constant 0 : i32
    %c0_i32_2 = arith.constant 0 : i32
    return %c0_i32, %c0_i32_0, %c0_i32_1 : i32, i32, i32
  }
  func.func @transform_1(%arg0: i32) -> (i32, i32, i32) {
    %c0_i32 = arith.constant 0 : i32
    %c0_i32_0 = arith.constant 0 : i32
    %c0_i32_1 = arith.constant 0 : i32
    return %arg0, %c0_i32, %c0_i32_0 : i32, i32, i32
  }
  func.func @transform_2(%arg0: i32) -> (i32, i32) {
    %c0_i32 = arith.constant 0 : i32
    %c0_i32_0 = arith.constant 0 : i32
    %c0_i32_1 = arith.constant 0 : i32
    return %c0_i32, %c0_i32_0 : i32, i32
  }
  func.func @transform_3(%arg0: i32) -> (i32, i32) {
    %c0_i32 = arith.constant 0 : i32
    %c0_i32_0 = arith.constant 0 : i32
    %c0_i32_1 = arith.constant 0 : i32
    return %c0_i32, %c0_i32_0 : i32, i32
  }
  func.func @transform_4(%arg0: i32) -> (i32, i32) {
    %c0_i32 = arith.constant 0 : i32
    %c0_i32_0 = arith.constant 0 : i32
    %c0_i32_1 = arith.constant 0 : i32
    return %c0_i32, %c0_i32_0 : i32, i32
  }
  func.func @transform_5(%arg0: i32) -> (i32, i32) {
    %c0_i32 = arith.constant 0 : i32
    %c0_i32_0 = arith.constant 0 : i32
    %c0_i32_1 = arith.constant 0 : i32
    return %c0_i32, %c0_i32_0 : i32, i32
  }
  func.func @transform_6(%arg0: i32) -> (i32, i32) {
    %c0_i32 = arith.constant 0 : i32
    %c0_i32_0 = arith.constant 0 : i32
    %c0_i32_1 = arith.constant 0 : i32
    return %c0_i32, %c0_i32_0 : i32, i32
  }
  func.func @transform_7(%arg0: i32) -> (i32, i32) {
    %c0_i32 = arith.constant 0 : i32
    %c0_i32_0 = arith.constant 0 : i32
    %c0_i32_1 = arith.constant 0 : i32
    return %c0_i32, %c0_i32_0 : i32, i32
  }
  func.func @transform_8(%arg0: i32) -> (i32, i32, i32) {
    %c0_i32 = arith.constant 0 : i32
    %c0_i32_0 = arith.constant 0 : i32
    %c0_i32_1 = arith.constant 0 : i32
    return %arg0, %c0_i32, %c0_i32_0 : i32, i32, i32
  }
}

</mosaic_0001>

<llo_original>
// kernel: tpu_custom_call.1
$region0: #{tpu_custom_call.1}
  #allocation0 [shape = 'u32[]', space=smem, size = 0x4, offset = 0x4, fixed_abs, tag = 'smem constant byte address 0x4 - core index']
  #allocation1 [shape = 'u32[144,128]{1,0:T(1,128)}', space=vmem, size = 0x12000, scoped, tag = 'internal scratch']
  %s0 = inlined_call_operand.hbm [shape: f32[1,8,32], index: 0, kind: input, shape index: {}]
  %s1 = inlined_call_operand.hbm [shape: f32[2,8,32], index: 1, kind: input, shape index: {}]
  %s2 = inlined_call_operand.hbm [shape: bf16[32,32], index: 2, kind: input, shape index: {}]
  %s3 = inlined_call_operand.vmem [shape: f32[1,32], index: 3, kind: input, shape index: {}]
  %s4 = inlined_call_operand.hbm [shape: bf16[32,64], index: 4, kind: input, shape index: {}]
  %s5 = inlined_call_operand.vmem [shape: f32[1,64], index: 5, kind: input, shape index: {}]
  %s6 = inlined_call_operand.hbm [shape: bf16[32,32], index: 6, kind: input, shape index: {}]
  %s7 = inlined_call_operand.vmem [shape: f32[1,32], index: 7, kind: input, shape index: {}]
  %s8 = inlined_call_operand.hbm [shape: bf16[2,8,32], index: 8, kind: output, shape index: {}]
  %s9 = sld [smem:[#allocation0]]
  $region85: #{tpu_custom_call.1} parent=0
    _
  %s11 = ssub.s32 1, %s9
  %s12 = scalar_select 0, %s11, %s9
  $region1: #{tpu_custom_call.1} parent=0
    #allocation2 [shape = 'u8[4096]{0}', space=vmem, size = 0x1000, scoped, tag = 'input window, operand 0, single buffered']
    #allocation3 [shape = 's32[2]{0}', space=sflag, size = 0x8, scoped, tag = 'scoped memory for tpu_custom_call.1']
    #allocation4 [shape = 's32[2]{0}', space=sflag, size = 0x8, scoped, tag = 'scoped memory for tpu_custom_call.1']
    #allocation5 [shape = 'u8[8192]{0}', space=vmem, size = 0x2000, scoped, tag = 'input window, operand 1']
    #allocation6 [shape = 's32[2]{0}', space=sflag, size = 0x8, scoped, tag = 'scoped memory for tpu_custom_call.1']
    #allocation7 [shape = 'u8[8192]{0}', space=vmem, size = 0x2000, scoped, tag = 'input window, operand 2, single buffered']
    #allocation8 [shape = 'u8[8192]{0}', space=vmem, size = 0x2000, scoped, tag = 'input window, operand 4, single buffered']
    #allocation9 [shape = 's32[1]{0}', space=sflag, size = 0x4, scoped, tag = 'scoped memory for tpu_custom_call.1']
    #allocation10 [shape = 'u8[8192]{0}', space=vmem, size = 0x2000, scoped, tag = 'input window, operand 6, single buffered']
    #allocation11 [shape = 'u8[4096]{0}', space=vmem, size = 0x1000, scoped, tag = 'output window, operand 0']
    %13 = vsyncpa [#allocation3], 0
    %14 = vsyncpa [#allocation6], 0
    %s15 = scalar_lea.sflag [#allocation6], 1
    %16 = vsyncpa %s15, 0
    %17 = vsyncpa [#allocation9], 0
    %18 = vsyncpa [#allocation4], 0
    %s19 = scalar_lea.sflag [#allocation4], 1
    %20 = vsyncpa %s19, 0
    loop: start=0, step=1, limit=4
    $region2: #{tpu_custom_call.1} parent=1 // loop_pre_header
      _
    $region3: #{tpu_custom_call.1} parent=1 // loop_header
      %s22 = sphi 0, %s26
      %p23 = scmp.ge.s32.totalorder %s22, 4
      %s30 = sphi 0, %s30
      %s32 = sphi 0, %s30
      %s33 = sphi 0, %s32
      %s47 = sphi 0, %s33
      %s53 = sphi 0, %s55
      %s56 = sphi 0, %s53
      %s57 = sphi 0, %s56
      %s73 = sphi 0, %s57
      %s77 = sphi 0, %s77
      %s79 = sphi 0, %s77
      %s80 = sphi 0, %s79
      %s94 = sphi 0, %s80
      %s98 = sphi 0, %s98
      %s100 = sphi 0, %s98
      %s101 = sphi 0, %s100
      %s115 = sphi 0, %s101
      %s119 = sphi 0, %s119
      %s121 = sphi 0, %s119
      %s122 = sphi 0, %s121
      %s136 = sphi 0, %s122
      %s140 = sphi 0, %s140
      %s142 = sphi 0, %s140
      %s143 = sphi 0, %s142
      %s157 = sphi 0, %s143
      %s161 = sphi 0, %s161
      %s163 = sphi 0, %s161
      %s164 = sphi 0, %s163
      %s178 = sphi 0, %s164
      %s182 = sphi 0, %s182
      %s184 = sphi 0, %s182
      %s185 = sphi 0, %s184
      %s199 = sphi 0, %s185
      %s205 = sphi 0, %s207
      %s208 = sphi 0, %s205
      %s209 = sphi 0, %s208
      %s225 = sphi 0, %s209
    $region4: #{tpu_custom_call.1} parent=1 // loop_header_branch
      %25 = sbr.rel (%p23) target = $region8
    $region5: #{tpu_custom_call.1} parent=1 // loop_body
      %s27 = ssub.s32 %s22, 1
      %s28 = ssub.s32 %s22, 2
      %s29 = sadd.s32 %s22, 1
      %s31 = sadd.s32 %s30, 1
      %p34 = scmp.eq.s32.totalorder %s22, 1
      %p35 = scmp.ne.s32.totalorder %s30, %s32
      %p36 = scmp.eq.s32.totalorder %s22, 0
      %p37 = por %p35, %p36
      %p38 = scmp.ne.s32.totalorder %s30, %s32
      %p39 = scmp.eq.s32.totalorder %s27, 1
      %p40 = por %p38, %p39
      %p41 = scmp.ne.s32.totalorder %s32, %s33
      %p42 = scmp.eq.s32.totalorder %s27, 0
      %p43 = por %p41, %p42
      %p44 = scmp.ne.s32.totalorder %s32, %s33
      %p45 = scmp.eq.s32.totalorder %s28, 1
      %p46 = por %p44, %p45
      %p48 = scmp.ne.s32.totalorder %s33, %s47
      %p49 = scmp.eq.s32.totalorder %s28, 0
      %p50 = por %p48, %p49
      %s51 = ssub.s32 %s22, %s29
      %p52 = scmp.eq.s32.totalorder %s51, 0
      %s54 = sadd.s32 %s53, 1
      %s55 = scalar_select %p52, %s53, %s54
      %p58 = pneg %p52
      %p59 = scmp.eq.s32.totalorder %s22, 1
      %p60 = por %p58, %p59
      %p61 = scmp.ne.s32.totalorder %s53, %s56
      %p62 = scmp.eq.s32.totalorder %s22, 0
      %p63 = por %p61, %p62
      %p64 = scmp.ne.s32.totalorder %s53, %s56
      %p65 = scmp.eq.s32.totalorder %s27, 1
      %p66 = por %p64, %p65
      %p67 = scmp.ne.s32.totalorder %s56, %s57
      %p68 = scmp.eq.s32.totalorder %s27, 0
      %p69 = por %p67, %p68
      %p70 = scmp.ne.s32.totalorder %s56, %s57
      %p71 = scmp.eq.s32.totalorder %s28, 1
      %p72 = por %p70, %p71
      %p74 = scmp.ne.s32.totalorder %s57, %s73
      %p75 = scmp.eq.s32.totalorder %s28, 0
      %p76 = por %p74, %p75
      %s78 = sadd.s32 %s77, 1
      %p81 = scmp.eq.s32.totalorder %s22, 1
      %p82 = scmp.ne.s32.totalorder %s77, %s79
      %p83 = scmp.eq.s32.totalorder %s22, 0
      %p84 = por %p82, %p83
      %p85 = scmp.ne.s32.totalorder %s77, %s79
      %p86 = scmp.eq.s32.totalorder %s27, 1
      %p87 = por %p85, %p86
      %p88 = scmp.ne.s32.totalorder %s79, %s80
      %p89 = scmp.eq.s32.totalorder %s27, 0
      %p90 = por %p88, %p89
      %p91 = scmp.ne.s32.totalorder %s79, %s80
      %p92 = scmp.eq.s32.totalorder %s28, 1
      %p93 = por %p91, %p92
      %p95 = scmp.ne.s32.totalorder %s80, %s94
      %p96 = scmp.eq.s32.totalorder %s28, 0
      %p97 = por %p95, %p96
      %s99 = sadd.s32 %s98, 1
      %p102 = scmp.eq.s32.totalorder %s22, 1
      %p103 = scmp.ne.s32.totalorder %s98, %s100
      %p104 = scmp.eq.s32.totalorder %s22, 0
      %p105 = por %p103, %p104
      %p106 = scmp.ne.s32.totalorder %s98, %s100
      %p107 = scmp.eq.s32.totalorder %s27, 1
      %p108 = por %p106, %p107
      %p109 = scmp.ne.s32.totalorder %s100, %s101
      %p110 = scmp.eq.s32.totalorder %s27, 0
      %p111 = por %p109, %p110
      %p112 = scmp.ne.s32.totalorder %s100, %s101
      %p113 = scmp.eq.s32.totalorder %s28, 1
      %p114 = por %p112, %p113
      %p116 = scmp.ne.s32.totalorder %s101, %s115
      %p117 = scmp.eq.s32.totalorder %s28, 0
      %p118 = por %p116, %p117
      %s120 = sadd.s32 %s119, 1
      %p123 = scmp.eq.s32.totalorder %s22, 1
      %p124 = scmp.ne.s32.totalorder %s119, %s121
      %p125 = scmp.eq.s32.totalorder %s22, 0
      %p126 = por %p124, %p125
      %p127 = scmp.ne.s32.totalorder %s119, %s121
      %p128 = scmp.eq.s32.totalorder %s27, 1
      %p129 = por %p127, %p128
      %p130 = scmp.ne.s32.totalorder %s121, %s122
      %p131 = scmp.eq.s32.totalorder %s27, 0
      %p132 = por %p130, %p131
      %p133 = scmp.ne.s32.totalorder %s121, %s122
      %p134 = scmp.eq.s32.totalorder %s28, 1
      %p135 = por %p133, %p134
      %p137 = scmp.ne.s32.totalorder %s122, %s136
      %p138 = scmp.eq.s32.totalorder %s28, 0
      %p139 = por %p137, %p138
      %s141 = sadd.s32 %s140, 1
      %p144 = scmp.eq.s32.totalorder %s22, 1
      %p145 = scmp.ne.s32.totalorder %s140, %s142
      %p146 = scmp.eq.s32.totalorder %s22, 0
      %p147 = por %p145, %p146
      %p148 = scmp.ne.s32.totalorder %s140, %s142
      %p149 = scmp.eq.s32.totalorder %s27, 1
      %p150 = por %p148, %p149
      %p151 = scmp.ne.s32.totalorder %s142, %s143
      %p152 = scmp.eq.s32.totalorder %s27, 0
      %p153 = por %p151, %p152
      %p154 = scmp.ne.s32.totalorder %s142, %s143
      %p155 = scmp.eq.s32.totalorder %s28, 1
      %p156 = por %p154, %p155
      %p158 = scmp.ne.s32.totalorder %s143, %s157
      %p159 = scmp.eq.s32.totalorder %s28, 0
      %p160 = por %p158, %p159
      %s162 = sadd.s32 %s161, 1
      %p165 = scmp.eq.s32.totalorder %s22, 1
      %p166 = scmp.ne.s32.totalorder %s161, %s163
      %p167 = scmp.eq.s32.totalorder %s22, 0
      %p168 = por %p166, %p167
      %p169 = scmp.ne.s32.totalorder %s161, %s163
      %p170 = scmp.eq.s32.totalorder %s27, 1
      %p171 = por %p169, %p170
      %p172 = scmp.ne.s32.totalorder %s163, %s164
      %p173 = scmp.eq.s32.totalorder %s27, 0
      %p174 = por %p172, %p173
      %p175 = scmp.ne.s32.totalorder %s163, %s164
      %p176 = scmp.eq.s32.totalorder %s28, 1
      %p177 = por %p175, %p176
      %p179 = scmp.ne.s32.totalorder %s164, %s178
      %p180 = scmp.eq.s32.totalorder %s28, 0
      %p181 = por %p179, %p180
      %s183 = sadd.s32 %s182, 1
      %p186 = scmp.eq.s32.totalorder %s22, 1
      %p187 = scmp.ne.s32.totalorder %s182, %s184
      %p188 = scmp.eq.s32.totalorder %s22, 0
      %p189 = por %p187, %p188
      %p190 = scmp.ne.s32.totalorder %s182, %s184
      %p191 = scmp.eq.s32.totalorder %s27, 1
      %p192 = por %p190, %p191
      %p193 = scmp.ne.s32.totalorder %s184, %s185
      %p194 = scmp.eq.s32.totalorder %s27, 0
      %p195 = por %p193, %p194
      %p196 = scmp.ne.s32.totalorder %s184, %s185
      %p197 = scmp.eq.s32.totalorder %s28, 1
      %p198 = por %p196, %p197
      %p200 = scmp.ne.s32.totalorder %s185, %s199
      %p201 = scmp.eq.s32.totalorder %s28, 0
      %p202 = por %p200, %p201
      %s203 = ssub.s32 %s22, %s29
      %p204 = scmp.eq.s32.totalorder %s203, 0
      %s206 = sadd.s32 %s205, 1
      %s207 = scalar_select %p204, %s205, %s206
      %p210 = pneg %p204
      %p211 = scmp.eq.s32.totalorder %s22, 1
      %p212 = por %p210, %p211
      %p213 = scmp.ne.s32.totalorder %s205, %s208
      %p214 = scmp.eq.s32.totalorder %s22, 0
      %p215 = por %p213, %p214
      %p216 = scmp.ne.s32.totalorder %s205, %s208
      %p217 = scmp.eq.s32.totalorder %s27, 1
      %p218 = por %p216, %p217
      %p219 = scmp.ne.s32.totalorder %s208, %s209
      %p220 = scmp.eq.s32.totalorder %s27, 0
      %p221 = por %p219, %p220
      %p222 = scmp.ne.s32.totalorder %s208, %s209
      %p223 = scmp.eq.s32.totalorder %s28, 1
      %p224 = por %p222, %p223
      %p226 = scmp.ne.s32.totalorder %s209, %s225
      %p227 = scmp.eq.s32.totalorder %s28, 0
      %p228 = por %p226, %p227
      %p229 = scmp.le.s32.totalorder 1, %s22
      %p230 = scmp.lt.s32.totalorder %s22, 3
      %p231 = pnand %p229, %p230
      %p232 = pneg %p231
      // Predicated region
      $region9: #{tpu_custom_call.1} parent=5 // pred_check
        _
      $region10: #{tpu_custom_call.1} parent=5 // pred_check_branch
        %234 = sbr.rel (%p231) target = $region12
      $region11: #{tpu_custom_call.1} parent=5 // pred_region
        %s235 = ssub.s32 %s22, 1
        // Predicated region
        $region13: #{tpu_custom_call.1} parent=11 // pred_check
          %p236 = pneg %p43
        $region14: #{tpu_custom_call.1} parent=11 // pred_check_branch
          %238 = sbr.rel (%p236) target = $region16
        $region15: #{tpu_custom_call.1} parent=11 // pred_region
          %s240 = ssub.s32 128, 128
          %241 = vsyncadd [#allocation3], %s240
          %s243 = sshll.u32 [#allocation2], 4
          %s244 = int_to_ptr.vmem [resolvable:$true] %s243
          %246 = dma.hbm_to_vmem [thread:$0]  %s0, 128, %s244, [#allocation3]
        $region16: #{tpu_custom_call.1} parent=11 // pred_fallthru
          _
        // Predicated region
        $region17: #{tpu_custom_call.1} parent=11 // pred_check
          %p247 = pneg %p90
        $region18: #{tpu_custom_call.1} parent=11 // pred_check_branch
          %249 = sbr.rel (%p247) target = $region20
        $region19: #{tpu_custom_call.1} parent=11 // pred_region
          %s251 = ssub.s32 256, 256
          %252 = vsyncadd [#allocation6], %s251
          %s253 = sshll.u32 [#allocation7], 4
          %s254 = int_to_ptr.vmem [resolvable:$true] %s253
          %259 = dma.hbm_to_vmem [thread:$0]  %s2, 256, %s254, [#allocation6], 64, 64, 4
        $region20: #{tpu_custom_call.1} parent=11 // pred_fallthru
          _
        // Predicated region
        $region21: #{tpu_custom_call.1} parent=11 // pred_check
          %p260 = pneg %p111
        $region22: #{tpu_custom_call.1} parent=11 // pred_check_branch
          %262 = sbr.rel (%p260) target = $region24
        $region23: #{tpu_custom_call.1} parent=11 // pred_region
          _
        $region24: #{tpu_custom_call.1} parent=11 // pred_fallthru
          _
        // Predicated region
        $region25: #{tpu_custom_call.1} parent=11 // pred_check
          %p263 = pneg %p132
        $region26: #{tpu_custom_call.1} parent=11 // pred_check_branch
          %265 = sbr.rel (%p263) target = $region28
        $region27: #{tpu_custom_call.1} parent=11 // pred_region
          %s267 = ssub.s32 256, 256
          %268 = vsyncadd [#allocation9], %s267
          %s269 = sshll.u32 [#allocation8], 4
          %s270 = int_to_ptr.vmem [resolvable:$true] %s269
          %275 = dma.hbm_to_vmem [thread:$0]  %s4, 256, %s270, [#allocation9], 64, 64, 4
        $region28: #{tpu_custom_call.1} parent=11 // pred_fallthru
          _
        // Predicated region
        $region29: #{tpu_custom_call.1} parent=11 // pred_check
          %p276 = pneg %p153
        $region30: #{tpu_custom_call.1} parent=11 // pred_check_branch
          %278 = sbr.rel (%p276) target = $region32
        $region31: #{tpu_custom_call.1} parent=11 // pred_region
          _
        $region32: #{tpu_custom_call.1} parent=11 // pred_fallthru
          _
        // Predicated region
        $region33: #{tpu_custom_call.1} parent=11 // pred_check
          %p279 = pneg %p174
        $region34: #{tpu_custom_call.1} parent=11 // pred_check_branch
          %281 = sbr.rel (%p279) target = $region36
        $region35: #{tpu_custom_call.1} parent=11 // pred_region
          %s283 = ssub.s32 256, 256
          %284 = vsyncadd [#allocation9], %s283
          %s285 = sshll.u32 [#allocation10], 4
          %s286 = int_to_ptr.vmem [resolvable:$true] %s285
          %291 = dma.hbm_to_vmem [thread:$0]  %s6, 256, %s286, [#allocation9], 64, 64, 4
        $region36: #{tpu_custom_call.1} parent=11 // pred_fallthru
          _
        // Predicated region
        $region37: #{tpu_custom_call.1} parent=11 // pred_check
          %p292 = pneg %p195
        $region38: #{tpu_custom_call.1} parent=11 // pred_check_branch
          %294 = sbr.rel (%p292) target = $region40
        $region39: #{tpu_custom_call.1} parent=11 // pred_region
          _
        $region40: #{tpu_custom_call.1} parent=11 // pred_fallthru
          _
      $region12: #{tpu_custom_call.1} parent=5 // pred_fallthru
        _
      %p295 = scmp.lt.s32.totalorder %s22, 2
      // Predicated region
      $region41: #{tpu_custom_call.1} parent=5 // pred_check
        %p296 = pneg %p295
      $region42: #{tpu_custom_call.1} parent=5 // pred_check_branch
        %298 = sbr.rel (%p296) target = $region44
      $region43: #{tpu_custom_call.1} parent=5 // pred_region
        // Predicated region
        $region45: #{tpu_custom_call.1} parent=43 // pred_check
          %p299 = pneg %p63
        $region46: #{tpu_custom_call.1} parent=43 // pred_check_branch
          %301 = sbr.rel (%p299) target = $region48
        $region47: #{tpu_custom_call.1} parent=43 // pred_region
          %s302 = sand.u32 %s22, 1
          %s303 = scalar_lea.sflag [#allocation6], %s302
          %s304 = sand.u32 %s53, 1
          %s305 = smul.addr %s304, 8
          %s306 = scalar_lea.vmem [#allocation5], %s305
          %s308 = ssub.s32 128, 128
          %309 = vsyncadd %s303, %s308
          %s310 = smul.addr %s22, 128
          %s311 = scalar_lea.hbm %s1, %s310
          %s313 = sshll.u32 %s306, 4
          %s314 = int_to_ptr.vmem [resolvable:$true] %s313
          %316 = dma.hbm_to_vmem [thread:$0]  %s311, 128, %s314, %s303
        $region48: #{tpu_custom_call.1} parent=43 // pred_fallthru
          _
      $region44: #{tpu_custom_call.1} parent=5 // pred_fallthru
        _
      %p317 = scmp.le.s32.totalorder 1, %s22
      %p318 = scmp.lt.s32.totalorder %s22, 3
      %p319 = pnand %p317, %p318
      %p320 = pneg %p319
      // Predicated region
      $region49: #{tpu_custom_call.1} parent=5 // pred_check
        _
      $region50: #{tpu_custom_call.1} parent=5 // pred_check_branch
        %322 = sbr.rel (%p319) target = $region52
      $region51: #{tpu_custom_call.1} parent=5 // pred_region
        %s323 = ssub.s32 %s22, 1
        // Predicated region
        $region53: #{tpu_custom_call.1} parent=51 // pred_check
          %p324 = pneg %p43
        $region54: #{tpu_custom_call.1} parent=51 // pred_check_branch
          %326 = sbr.rel (%p324) target = $region56
        $region55: #{tpu_custom_call.1} parent=51 // pred_region
          %327 = dma.done [#allocation3], 128
        $region56: #{tpu_custom_call.1} parent=51 // pred_fallthru
          _
        %s328 = sand.u32 %s27, 1
        %s329 = scalar_lea.sflag [#allocation6], %s328
        %s330 = sand.u32 %s56, 1
        %s331 = smul.addr %s330, 8
        %s332 = scalar_lea.vmem [#allocation5], %s331
        // Predicated region
        $region57: #{tpu_custom_call.1} parent=51 // pred_check
          %p333 = pneg %p69
        $region58: #{tpu_custom_call.1} parent=51 // pred_check_branch
          %335 = sbr.rel (%p333) target = $region60
        $region59: #{tpu_custom_call.1} parent=51 // pred_region
          %336 = dma.done %s329, 128
        $region60: #{tpu_custom_call.1} parent=51 // pred_fallthru
          _
        // Predicated region
        $region61: #{tpu_custom_call.1} parent=51 // pred_check
          %p337 = pneg %p90
        $region62: #{tpu_custom_call.1} parent=51 // pred_check_branch
          %339 = sbr.rel (%p337) target = $region64
        $region63: #{tpu_custom_call.1} parent=51 // pred_region
          %340 = dma.done [#allocation6], 256
        $region64: #{tpu_custom_call.1} parent=51 // pred_fallthru
          _
        // Predicated region
        $region65: #{tpu_custom_call.1} parent=51 // pred_check
          %p341 = pneg %p132
        $region66: #{tpu_custom_call.1} parent=51 // pred_check_branch
          %343 = sbr.rel (%p341) target = $region68
        $region67: #{tpu_custom_call.1} parent=51 // pred_region
          %344 = dma.done [#allocation9], 256
        $region68: #{tpu_custom_call.1} parent=51 // pred_fallthru
          _
        // Predicated region
        $region69: #{tpu_custom_call.1} parent=51 // pred_check
          %p345 = pneg %p174
        $region70: #{tpu_custom_call.1} parent=51 // pred_check_branch
          %347 = sbr.rel (%p345) target = $region72
        $region71: #{tpu_custom_call.1} parent=51 // pred_region
          %348 = dma.done [#allocation9], 256
        $region72: #{tpu_custom_call.1} parent=51 // pred_fallthru
          _
        %p349 = pneg %p43
        %p350 = pneg %p40
        %s351 = sand.u32 %s27, 1
        %s352 = scalar_lea.sflag [#allocation6], %s351
        %s353 = sand.u32 %s56, 1
        %s354 = smul.addr %s353, 8
        %s355 = scalar_lea.vmem [#allocation5], %s354
        %p356 = pneg %p69
        %p357 = pneg %p66
        %p358 = pneg %p90
        %p359 = pneg %p87
        %p360 = pneg %p111
        %p361 = pneg %p108
        %p362 = pneg %p132
        %p363 = pneg %p129
        %p364 = pneg %p153
        %p365 = pneg %p150
        %p366 = pneg %p174
        %p367 = pneg %p171
        %p368 = pneg %p195
        %p369 = pneg %p192
        %p370 = pneg %p221
        %p371 = pneg %p218
        %s372 = sand.u32 %s208, 1
        %s373 = scalar_lea.sflag [#allocation4], %s372
        %s374 = sand.u32 %s208, 1
        %s375 = smul.addr %s374, 4
        %s376 = scalar_lea.vmem [#allocation11], %s375
        %v378 = vld [vmem:[#allocation2] sm:$0xff]
        %v379 = vpack.c.bf16 %v378, %v378
        %v380 = vld [vmem:[%s332] sm:$0xff]
        %v381 = vpack.c.bf16 %v380, %v380
        %v382 = vld [vmem:[#allocation7] sm:$0xf]
        %v383 = vld [vmem:[#allocation7 + $0x4] sm:$0xf]
        %v384 = vld [vmem:[#allocation7 + $0x8] sm:$0xf]
        %v385 = vld [vmem:[#allocation7 + $0xc] sm:$0xf]
        %v386 = vld [vmem:[%s3] sm:$0x1]
        %v388 = vlaneseq
        %v389 = vshrl.u32 %v388, 7
        %v390 = vsub.s32 0, %v389
        %v391 = vrot.slane %v386, %v390
        %v397 = vunpack.c.l.b16 %v382
        %v398 = vunpack.c.l.b16 %v383
        %v399 = vunpack.c.l.b16 %v384
        %v400 = vunpack.c.l.b16 %v385
        %v401 = vpack.c.b16 %v398, %v397
        %v402 = vpack.c.b16 %v400, %v399
        %vm405 = vcmask 261120
        %v407 = vsel %vm405, %v379, 0
        %409 = vmatprep.subr.bf16.mxu0 0
        %410 = vmatpush1.bf16.msra.mxu0 0
        %411 = vmatprep.subr.bf16.mxu0 0
        %412 = vmatpush1.bf16.msra.mxu0 0
        %413 = vmatprep.subr.bf16.mxu0 0
        %414 = vmatpush1.bf16.msra.mxu0 0
        %415 = vmatprep.subr.bf16.mxu0 0
        %416 = vmatpush1.bf16.msra.mxu0 0
        %417 = vmatprep.subr.bf16.mxu0 0
        %418 = vmatpush1.bf16.msra.mxu0 0
        %419 = vmatprep.subr.bf16.mxu0 0
        %420 = vmatpush1.bf16.msra.mxu0 0
        %421 = vmatprep.subr.bf16.mxu0 0
        %422 = vmatpush1.bf16.msra.mxu0 %v402
        %423 = vmatprep.subr.bf16.mxu0 0
        %424 = vmatpush1.bf16.msra.mxu0 %v401
        %425 = vmatprep.subr.bf16.mxu0 0
        %426 = vmatpush2.bf16.msra.mxu0 0
        %427 = vmatprep.subr.bf16.mxu0 0
        %428 = vmatpush2.bf16.msra.mxu0 0
        %429 = vmatprep.subr.bf16.mxu0 0
        %430 = vmatpush2.bf16.msra.mxu0 0
        %431 = vmatprep.subr.bf16.mxu0 0
        %432 = vmatpush2.bf16.msra.mxu0 0
        %433 = vmatprep.subr.bf16.mxu0 0
        %434 = vmatpush2.bf16.msra.mxu0 0
        %435 = vmatprep.subr.bf16.mxu0 0
        %436 = vmatpush2.bf16.msra.mxu0 0
        %437 = vmatprep.subr.bf16.mxu0 0
        %438 = vmatpush2.bf16.msra.mxu0 0
        %439 = vmatprep.subr.bf16.mxu0 0
        %440 = vmatpush2.bf16.msra.mxu0 0
        %441 = vmatprep.mubr.bf16.mxu0 0
        %442 = vmatmul.mubr.bf16.gmra.mxu0 %v407
        %v443 = vpop.f32.mrf.mxu0
        %v444 = vadd.f32 %v391, %v443
        %v445 = vpop.f32.mrf.mxu0
        %v446 = vpop.f32.mrf.mxu0
        %v447 = vpop.f32.mrf.mxu0
        %448 = vdwg.mxu0
        %v449 = vld [vmem:[#allocation8] sm:$0xf]
        %v450 = vld [vmem:[#allocation8 + $0x4] sm:$0xf]
        %v451 = vld [vmem:[#allocation8 + $0x8] sm:$0xf]
        %v452 = vld [vmem:[#allocation8 + $0xc] sm:$0xf]
        %v453 = vld [vmem:[%s5] sm:$0x1]
        %v455 = vlaneseq
        %v456 = vshrl.u32 %v455, 7
        %v457 = vsub.s32 0, %v456
        %v458 = vrot.slane %v453, %v457
        %v464 = vunpack.c.l.b16 %v449
        %v465 = vunpack.c.l.b16 %v450
        %v466 = vunpack.c.l.b16 %v451
        %v467 = vunpack.c.l.b16 %v452
        %v468 = vpack.c.b16 %v465, %v464
        %v469 = vpack.c.b16 %v467, %v466
        %v473 = vsel %vm405, %v381, 0
        %475 = vmatprep.subr.bf16.mxu0 0
        %476 = vmatpush1.bf16.msra.mxu0 0
        %477 = vmatprep.subr.bf16.mxu0 0
        %478 = vmatpush1.bf16.msra.mxu0 0
        %479 = vmatprep.subr.bf16.mxu0 0
        %480 = vmatpush1.bf16.msra.mxu0 0
        %481 = vmatprep.subr.bf16.mxu0 0
        %482 = vmatpush1.bf16.msra.mxu0 0
        %483 = vmatprep.subr.bf16.mxu0 0
        %484 = vmatpush1.bf16.msra.mxu0 0
        %485 = vmatprep.subr.bf16.mxu0 0
        %486 = vmatpush1.bf16.msra.mxu0 0
        %487 = vmatprep.subr.bf16.mxu0 0
        %488 = vmatpush1.bf16.msra.mxu0 %v469
        %489 = vmatprep.subr.bf16.mxu0 0
        %490 = vmatpush1.bf16.msra.mxu0 %v468
        %491 = vmatprep.subr.bf16.mxu0 0
        %492 = vmatpush2.bf16.msra.mxu0 0
        %493 = vmatprep.subr.bf16.mxu0 0
        %494 = vmatpush2.bf16.msra.mxu0 0
        %495 = vmatprep.subr.bf16.mxu0 0
        %496 = vmatpush2.bf16.msra.mxu0 0
        %497 = vmatprep.subr.bf16.mxu0 0
        %498 = vmatpush2.bf16.msra.mxu0 0
        %499 = vmatprep.subr.bf16.mxu0 0
        %500 = vmatpush2.bf16.msra.mxu0 0
        %501 = vmatprep.subr.bf16.mxu0 0
        %502 = vmatpush2.bf16.msra.mxu0 0
        %503 = vmatprep.subr.bf16.mxu0 0
        %504 = vmatpush2.bf16.msra.mxu0 0
        %505 = vmatprep.subr.bf16.mxu0 0
        %506 = vmatpush2.bf16.msra.mxu0 0
        %507 = vmatprep.mubr.bf16.mxu0 0
        %508 = vmatmul.mubr.bf16.gmra.mxu0 %v473
        %v509 = vpop.f32.mrf.mxu0
        %v510 = vadd.f32 %v458, %v509
        %v511 = vpop.f32.mrf.mxu0
        %v512 = vpop.f32.mrf.mxu0
        %v513 = vpop.f32.mrf.mxu0
        %514 = vdwg.mxu0
        %v515 = vpack.c.bf16 %v444, %v444
        %v516 = vpack.c.bf16 %v510, %v510
        %vm517 = vcmask 64512
        %v519 = vsel %vm517, %v515, 0
        %v522 = vsel %vm517, %v516, 0
        %524 = vmatprep.subr.bf16.mxu0 0
        %525 = vmatpush1.bf16.xpose.msra.mxu0 0
        %526 = vmatprep.subr.bf16.mxu0 0
        %527 = vmatpush1.bf16.xpose.msra.mxu0 0
        %528 = vmatprep.subr.bf16.mxu0 0
        %529 = vmatpush1.bf16.xpose.msra.mxu0 0
        %530 = vmatprep.subr.bf16.mxu0 0
        %531 = vmatpush1.bf16.xpose.msra.mxu0 0
        %532 = vmatprep.subr.bf16.mxu0 0
        %533 = vmatpush1.bf16.xpose.msra.mxu0 0
        %534 = vmatprep.subr.bf16.mxu0 0
        %535 = vmatpush1.bf16.xpose.msra.mxu0 0
        %536 = vmatprep.subr.bf16.mxu0 0
        %537 = vmatpush1.bf16.xpose.msra.mxu0 0
        %538 = vmatprep.subr.bf16.mxu0 0
        %539 = vmatpush1.bf16.xpose.msra.mxu0 %v522
        %540 = vmatprep.subr.bf16.mxu0 0
        %541 = vmatpush2.bf16.xpose.msra.mxu0 0
        %542 = vmatprep.subr.bf16.mxu0 0
        %543 = vmatpush2.bf16.xpose.msra.mxu0 0
        %544 = vmatprep.subr.bf16.mxu0 0
        %545 = vmatpush2.bf16.xpose.msra.mxu0 0
        %546 = vmatprep.subr.bf16.mxu0 0
        %547 = vmatpush2.bf16.xpose.msra.mxu0 0
        %548 = vmatprep.subr.bf16.mxu0 0
        %549 = vmatpush2.bf16.xpose.msra.mxu0 0
        %550 = vmatprep.subr.bf16.mxu0 0
        %551 = vmatpush2.bf16.xpose.msra.mxu0 0
        %552 = vmatprep.subr.bf16.mxu0 0
        %553 = vmatpush2.bf16.xpose.msra.mxu0 0
        %554 = vmatprep.subr.bf16.mxu0 0
        %555 = vmatpush2.bf16.xpose.msra.mxu0 0
        %556 = vmatprep.mubr.bf16.mxu0 0
        %557 = vmatmul.mubr.bf16.gmra.mxu0 %v519
        %v558 = vpop.f32.mrf.mxu0
        %v559 = vadd.f32 0.0, %v558
        %v560 = vpop.f32.mrf.mxu0
        %v561 = vpop.f32.mrf.mxu0
        %v562 = vpop.f32.mrf.mxu0
        %563 = vdwg.mxu0
        %v564 = vmul.f32 %v559, 0.35355338
        %v565 = vsel %vm517, %v564, -inf
        %566 = vmax.xlane.f32.xlu0 %v565
        %v567 = vpop.xlane.xlu0 %566
        %v568 = vsub.f32 %v564, %v567
        %v569 = vmul.f32 %v568, 1.442695
        %v570 = vpow.pop %v569
        %v571 = vsel %vm517, %v570, 0.0
        %572 = vadd.xlane.f32.xlu0 %v571
        %v573 = vpop.xlane.xlu0 %572
        %v574 = vrcp.pop %v573
        %v575 = vmul.f32 %v570, %v574
        %v576 = vpack.c.bf16 %v575, %v575
        %578 = vrot.lane.b32.xlu0 %v516, 96
        %v579 = vpop.permute.xlu0 %578
        %v581 = vsel %vm517, %v576, 0
        %vm583 = vcmask 1043456
        %v585 = vsel %vm583, %v579, 0
        %587 = vmatprep.subr.bf16.mxu0 0
        %588 = vmatpush1.bf16.msra.mxu0 0
        %589 = vmatprep.subr.bf16.mxu0 0
        %590 = vmatpush1.bf16.msra.mxu0 0
        %591 = vmatprep.subr.bf16.mxu0 0
        %592 = vmatpush1.bf16.msra.mxu0 0
        %593 = vmatprep.subr.bf16.mxu0 0
        %594 = vmatpush1.bf16.msra.mxu0 0
        %595 = vmatprep.subr.bf16.mxu0 0
        %596 = vmatpush1.bf16.msra.mxu0 0
        %597 = vmatprep.subr.bf16.mxu0 0
        %598 = vmatpush1.bf16.msra.mxu0 0
        %599 = vmatprep.subr.bf16.mxu0 0
        %600 = vmatpush1.bf16.msra.mxu0 0
        %601 = vmatprep.subr.bf16.mxu0 0
        %602 = vmatpush1.bf16.msra.mxu0 %v585
        %603 = vmatprep.subr.bf16.mxu0 0
        %604 = vmatpush2.bf16.msra.mxu0 0
        %605 = vmatprep.subr.bf16.mxu0 0
        %606 = vmatpush2.bf16.msra.mxu0 0
        %607 = vmatprep.subr.bf16.mxu0 0
        %608 = vmatpush2.bf16.msra.mxu0 0
        %609 = vmatprep.subr.bf16.mxu0 0
        %610 = vmatpush2.bf16.msra.mxu0 0
        %611 = vmatprep.subr.bf16.mxu0 0
        %612 = vmatpush2.bf16.msra.mxu0 0
        %613 = vmatprep.subr.bf16.mxu0 0
        %614 = vmatpush2.bf16.msra.mxu0 0
        %615 = vmatprep.subr.bf16.mxu0 0
        %616 = vmatpush2.bf16.msra.mxu0 0
        %617 = vmatprep.subr.bf16.mxu0 0
        %618 = vmatpush2.bf16.msra.mxu0 0
        %619 = vmatprep.mubr.bf16.mxu0 0
        %620 = vmatmul.mubr.bf16.gmra.mxu0 %v581
        %v621 = vpop.f32.mrf.mxu0
        %v622 = vadd.f32 0.0, %v621
        %v623 = vpop.f32.mrf.mxu0
        %v624 = vpop.f32.mrf.mxu0
        %v625 = vpop.f32.mrf.mxu0
        %626 = vdwg.mxu0
        %628 = vrot.lane.b32.xlu0 %v515, 120
        %v629 = vpop.permute.xlu0 %628
        %630 = vrot.lane.b32.xlu0 %v516, 120
        %v631 = vpop.permute.xlu0 %630
        %v633 = vsel %vm517, %v629, 0
        %v636 = vsel %vm517, %v631, 0
        %638 = vmatprep.subr.bf16.mxu0 0
        %639 = vmatpush1.bf16.xpose.msra.mxu0 0
        %640 = vmatprep.subr.bf16.mxu0 0
        %641 = vmatpush1.bf16.xpose.msra.mxu0 0
        %642 = vmatprep.subr.bf16.mxu0 0
        %643 = vmatpush1.bf16.xpose.msra.mxu0 0
        %644 = vmatprep.subr.bf16.mxu0 0
        %645 = vmatpush1.bf16.xpose.msra.mxu0 0
        %646 = vmatprep.subr.bf16.mxu0 0
        %647 = vmatpush1.bf16.xpose.msra.mxu0 0
        %648 = vmatprep.subr.bf16.mxu0 0
        %649 = vmatpush1.bf16.xpose.msra.mxu0 0
        %650 = vmatprep.subr.bf16.mxu0 0
        %651 = vmatpush1.bf16.xpose.msra.mxu0 0
        %652 = vmatprep.subr.bf16.mxu0 0
        %653 = vmatpush1.bf16.xpose.msra.mxu0 %v636
        %654 = vmatprep.subr.bf16.mxu0 0
        %655 = vmatpush2.bf16.xpose.msra.mxu0 0
        %656 = vmatprep.subr.bf16.mxu0 0
        %657 = vmatpush2.bf16.xpose.msra.mxu0 0
        %658 = vmatprep.subr.bf16.mxu0 0
        %659 = vmatpush2.bf16.xpose.msra.mxu0 0
        %660 = vmatprep.subr.bf16.mxu0 0
        %661 = vmatpush2.bf16.xpose.msra.mxu0 0
        %662 = vmatprep.subr.bf16.mxu0 0
        %663 = vmatpush2.bf16.xpose.msra.mxu0 0
        %664 = vmatprep.subr.bf16.mxu0 0
        %665 = vmatpush2.bf16.xpose.msra.mxu0 0
        %666 = vmatprep.subr.bf16.mxu0 0
        %667 = vmatpush2.bf16.xpose.msra.mxu0 0
        %668 = vmatprep.subr.bf16.mxu0 0
        %669 = vmatpush2.bf16.xpose.msra.mxu0 0
        %670 = vmatprep.mubr.bf16.mxu0 0
        %671 = vmatmul.mubr.bf16.gmra.mxu0 %v633
        %v672 = vpop.f32.mrf.mxu0
        %v673 = vadd.f32 0.0, %v672
        %v674 = vpop.f32.mrf.mxu0
        %v675 = vpop.f32.mrf.mxu0
        %v676 = vpop.f32.mrf.mxu0
        %677 = vdwg.mxu0
        %v678 = vmul.f32 %v673, 0.35355338
        %v679 = vsel %vm517, %v678, -inf
        %680 = vmax.xlane.f32.xlu0 %v679
        %v681 = vpop.xlane.xlu0 %680
        %v682 = vsub.f32 %v678, %v681
        %v683 = vmul.f32 %v682, 1.442695
        %v684 = vpow.pop %v683
        %v685 = vsel %vm517, %v684, 0.0
        %686 = vadd.xlane.f32.xlu0 %v685
        %v687 = vpop.xlane.xlu0 %686
        %v688 = vrcp.pop %v687
        %v689 = vmul.f32 %v684, %v688
        %v690 = vpack.c.bf16 %v689, %v689
        %691 = vrot.lane.b32.xlu0 %v516, 88
        %v692 = vpop.permute.xlu0 %691
        %v694 = vsel %vm517, %v690, 0
        %v697 = vsel %vm583, %v692, 0
        %699 = vmatprep.subr.bf16.mxu0 0
        %700 = vmatpush1.bf16.msra.mxu0 0
        %701 = vmatprep.subr.bf16.mxu0 0
        %702 = vmatpush1.bf16.msra.mxu0 0
        %703 = vmatprep.subr.bf16.mxu0 0
        %704 = vmatpush1.bf16.msra.mxu0 0
        %705 = vmatprep.subr.bf16.mxu0 0
        %706 = vmatpush1.bf16.msra.mxu0 0
        %707 = vmatprep.subr.bf16.mxu0 0
        %708 = vmatpush1.bf16.msra.mxu0 0
        %709 = vmatprep.subr.bf16.mxu0 0
        %710 = vmatpush1.bf16.msra.mxu0 0
        %711 = vmatprep.subr.bf16.mxu0 0
        %712 = vmatpush1.bf16.msra.mxu0 0
        %713 = vmatprep.subr.bf16.mxu0 0
        %714 = vmatpush1.bf16.msra.mxu0 %v697
        %715 = vmatprep.subr.bf16.mxu0 0
        %716 = vmatpush2.bf16.msra.mxu0 0
        %717 = vmatprep.subr.bf16.mxu0 0
        %718 = vmatpush2.bf16.msra.mxu0 0
        %719 = vmatprep.subr.bf16.mxu0 0
        %720 = vmatpush2.bf16.msra.mxu0 0
        %721 = vmatprep.subr.bf16.mxu0 0
        %722 = vmatpush2.bf16.msra.mxu0 0
        %723 = vmatprep.subr.bf16.mxu0 0
        %724 = vmatpush2.bf16.msra.mxu0 0
        %725 = vmatprep.subr.bf16.mxu0 0
        %726 = vmatpush2.bf16.msra.mxu0 0
        %727 = vmatprep.subr.bf16.mxu0 0
        %728 = vmatpush2.bf16.msra.mxu0 0
        %729 = vmatprep.subr.bf16.mxu0 0
        %730 = vmatpush2.bf16.msra.mxu0 0
        %731 = vmatprep.mubr.bf16.mxu0 0
        %732 = vmatmul.mubr.bf16.gmra.mxu0 %v694
        %v733 = vpop.f32.mrf.mxu0
        %v734 = vadd.f32 0.0, %v733
        %v735 = vpop.f32.mrf.mxu0
        %v736 = vpop.f32.mrf.mxu0
        %v737 = vpop.f32.mrf.mxu0
        %738 = vdwg.mxu0
        %739 = vrot.lane.b32.xlu0 %v515, 112
        %v740 = vpop.permute.xlu0 %739
        %741 = vrot.lane.b32.xlu0 %v516, 112
        %v742 = vpop.permute.xlu0 %741
        %v744 = vsel %vm517, %v740, 0
        %v747 = vsel %vm517, %v742, 0
        %749 = vmatprep.subr.bf16.mxu0 0
        %750 = vmatpush1.bf16.xpose.msra.mxu0 0
        %751 = vmatprep.subr.bf16.mxu0 0
        %752 = vmatpush1.bf16.xpose.msra.mxu0 0
        %753 = vmatprep.subr.bf16.mxu0 0
        %754 = vmatpush1.bf16.xpose.msra.mxu0 0
        %755 = vmatprep.subr.bf16.mxu0 0
        %756 = vmatpush1.bf16.xpose.msra.mxu0 0
        %757 = vmatprep.subr.bf16.mxu0 0
        %758 = vmatpush1.bf16.xpose.msra.mxu0 0
        %759 = vmatprep.subr.bf16.mxu0 0
        %760 = vmatpush1.bf16.xpose.msra.mxu0 0
        %761 = vmatprep.subr.bf16.mxu0 0
        %762 = vmatpush1.bf16.xpose.msra.mxu0 0
        %763 = vmatprep.subr.bf16.mxu0 0
        %764 = vmatpush1.bf16.xpose.msra.mxu0 %v747
        %765 = vmatprep.subr.bf16.mxu0 0
        %766 = vmatpush2.bf16.xpose.msra.mxu0 0
        %767 = vmatprep.subr.bf16.mxu0 0
        %768 = vmatpush2.bf16.xpose.msra.mxu0 0
        %769 = vmatprep.subr.bf16.mxu0 0
        %770 = vmatpush2.bf16.xpose.msra.mxu0 0
        %771 = vmatprep.subr.bf16.mxu0 0
        %772 = vmatpush2.bf16.xpose.msra.mxu0 0
        %773 = vmatprep.subr.bf16.mxu0 0
        %774 = vmatpush2.bf16.xpose.msra.mxu0 0
        %775 = vmatprep.subr.bf16.mxu0 0
        %776 = vmatpush2.bf16.xpose.msra.mxu0 0
        %777 = vmatprep.subr.bf16.mxu0 0
        %778 = vmatpush2.bf16.xpose.msra.mxu0 0
        %779 = vmatprep.subr.bf16.mxu0 0
        %780 = vmatpush2.bf16.xpose.msra.mxu0 0
        %781 = vmatprep.mubr.bf16.mxu0 0
        %782 = vmatmul.mubr.bf16.gmra.mxu0 %v744
        %v783 = vpop.f32.mrf.mxu0
        %v784 = vadd.f32 0.0, %v783
        %v785 = vpop.f32.mrf.mxu0
        %v786 = vpop.f32.mrf.mxu0
        %v787 = vpop.f32.mrf.mxu0
        %788 = vdwg.mxu0
        %v789 = vmul.f32 %v784, 0.35355338
        %v790 = vsel %vm517, %v789, -inf
        %791 = vmax.xlane.f32.xlu0 %v790
        %v792 = vpop.xlane.xlu0 %791
        %v793 = vsub.f32 %v789, %v792
        %v794 = vmul.f32 %v793, 1.442695
        %v795 = vpow.pop %v794
        %v796 = vsel %vm517, %v795, 0.0
        %797 = vadd.xlane.f32.xlu0 %v796
        %v798 = vpop.xlane.xlu0 %797
        %v799 = vrcp.pop %v798
        %v800 = vmul.f32 %v795, %v799
        %v801 = vpack.c.bf16 %v800, %v800
        %802 = vrot.lane.b32.xlu0 %v516, 80
        %v803 = vpop.permute.xlu0 %802
        %v805 = vsel %vm517, %v801, 0
        %v808 = vsel %vm583, %v803, 0
        %810 = vmatprep.subr.bf16.mxu0 0
        %811 = vmatpush1.bf16.msra.mxu0 0
        %812 = vmatprep.subr.bf16.mxu0 0
        %813 = vmatpush1.bf16.msra.mxu0 0
        %814 = vmatprep.subr.bf16.mxu0 0
        %815 = vmatpush1.bf16.msra.mxu0 0
        %816 = vmatprep.subr.bf16.mxu0 0
        %817 = vmatpush1.bf16.msra.mxu0 0
        %818 = vmatprep.subr.bf16.mxu0 0
        %819 = vmatpush1.bf16.msra.mxu0 0
        %820 = vmatprep.subr.bf16.mxu0 0
        %821 = vmatpush1.bf16.msra.mxu0 0
        %822 = vmatprep.subr.bf16.mxu0 0
        %823 = vmatpush1.bf16.msra.mxu0 0
        %824 = vmatprep.subr.bf16.mxu0 0
        %825 = vmatpush1.bf16.msra.mxu0 %v808
        %826 = vmatprep.subr.bf16.mxu0 0
        %827 = vmatpush2.bf16.msra.mxu0 0
        %828 = vmatprep.subr.bf16.mxu0 0
        %829 = vmatpush2.bf16.msra.mxu0 0
        %830 = vmatprep.subr.bf16.mxu0 0
        %831 = vmatpush2.bf16.msra.mxu0 0
        %832 = vmatprep.subr.bf16.mxu0 0
        %833 = vmatpush2.bf16.msra.mxu0 0
        %834 = vmatprep.subr.bf16.mxu0 0
        %835 = vmatpush2.bf16.msra.mxu0 0
        %836 = vmatprep.subr.bf16.mxu0 0
        %837 = vmatpush2.bf16.msra.mxu0 0
        %838 = vmatprep.subr.bf16.mxu0 0
        %839 = vmatpush2.bf16.msra.mxu0 0
        %840 = vmatprep.subr.bf16.mxu0 0
        %841 = vmatpush2.bf16.msra.mxu0 0
        %842 = vmatprep.mubr.bf16.mxu0 0
        %843 = vmatmul.mubr.bf16.gmra.mxu0 %v805
        %v844 = vpop.f32.mrf.mxu0
        %v845 = vadd.f32 0.0, %v844
        %v846 = vpop.f32.mrf.mxu0
        %v847 = vpop.f32.mrf.mxu0
        %v848 = vpop.f32.mrf.mxu0
        %849 = vdwg.mxu0
        %850 = vrot.lane.b32.xlu0 %v515, 104
        %v851 = vpop.permute.xlu0 %850
        %852 = vrot.lane.b32.xlu0 %v516, 104
        %v853 = vpop.permute.xlu0 %852
        %v855 = vsel %vm517, %v851, 0
        %v858 = vsel %vm517, %v853, 0
        %860 = vmatprep.subr.bf16.mxu0 0
        %861 = vmatpush1.bf16.xpose.msra.mxu0 0
        %862 = vmatprep.subr.bf16.mxu0 0
        %863 = vmatpush1.bf16.xpose.msra.mxu0 0
        %864 = vmatprep.subr.bf16.mxu0 0
        %865 = vmatpush1.bf16.xpose.msra.mxu0 0
        %866 = vmatprep.subr.bf16.mxu0 0
        %867 = vmatpush1.bf16.xpose.msra.mxu0 0
        %868 = vmatprep.subr.bf16.mxu0 0
        %869 = vmatpush1.bf16.xpose.msra.mxu0 0
        %870 = vmatprep.subr.bf16.mxu0 0
        %871 = vmatpush1.bf16.xpose.msra.mxu0 0
        %872 = vmatprep.subr.bf16.mxu0 0
        %873 = vmatpush1.bf16.xpose.msra.mxu0 0
        %874 = vmatprep.subr.bf16.mxu0 0
        %875 = vmatpush1.bf16.xpose.msra.mxu0 %v858
        %876 = vmatprep.subr.bf16.mxu0 0
        %877 = vmatpush2.bf16.xpose.msra.mxu0 0
        %878 = vmatprep.subr.bf16.mxu0 0
        %879 = vmatpush2.bf16.xpose.msra.mxu0 0
        %880 = vmatprep.subr.bf16.mxu0 0
        %881 = vmatpush2.bf16.xpose.msra.mxu0 0
        %882 = vmatprep.subr.bf16.mxu0 0
        %883 = vmatpush2.bf16.xpose.msra.mxu0 0
        %884 = vmatprep.subr.bf16.mxu0 0
        %885 = vmatpush2.bf16.xpose.msra.mxu0 0
        %886 = vmatprep.subr.bf16.mxu0 0
        %887 = vmatpush2.bf16.xpose.msra.mxu0 0
        %888 = vmatprep.subr.bf16.mxu0 0
        %889 = vmatpush2.bf16.xpose.msra.mxu0 0
        %890 = vmatprep.subr.bf16.mxu0 0
        %891 = vmatpush2.bf16.xpose.msra.mxu0 0
        %892 = vmatprep.mubr.bf16.mxu0 0
        %893 = vmatmul.mubr.bf16.gmra.mxu0 %v855
        %v894 = vpop.f32.mrf.mxu0
        %v895 = vadd.f32 0.0, %v894
        %v896 = vpop.f32.mrf.mxu0
        %v897 = vpop.f32.mrf.mxu0
        %v898 = vpop.f32.mrf.mxu0
        %899 = vdwg.mxu0
        %v900 = vmul.f32 %v895, 0.35355338
        %v901 = vsel %vm517, %v900, -inf
        %902 = vmax.xlane.f32.xlu0 %v901
        %v903 = vpop.xlane.xlu0 %902
        %v904 = vsub.f32 %v900, %v903
        %v905 = vmul.f32 %v904, 1.442695
        %v906 = vpow.pop %v905
        %v907 = vsel %vm517, %v906, 0.0
        %908 = vadd.xlane.f32.xlu0 %v907
        %v909 = vpop.xlane.xlu0 %908
        %v910 = vrcp.pop %v909
        %v911 = vmul.f32 %v906, %v910
        %v912 = vpack.c.bf16 %v911, %v911
        %913 = vrot.lane.b32.xlu0 %v516, 72
        %v914 = vpop.permute.xlu0 %913
        %v916 = vsel %vm517, %v912, 0
        %v919 = vsel %vm583, %v914, 0
        %921 = vmatprep.subr.bf16.mxu0 0
        %922 = vmatpush1.bf16.msra.mxu0 0
        %923 = vmatprep.subr.bf16.mxu0 0
        %924 = vmatpush1.bf16.msra.mxu0 0
        %925 = vmatprep.subr.bf16.mxu0 0
        %926 = vmatpush1.bf16.msra.mxu0 0
        %927 = vmatprep.subr.bf16.mxu0 0
        %928 = vmatpush1.bf16.msra.mxu0 0
        %929 = vmatprep.subr.bf16.mxu0 0
        %930 = vmatpush1.bf16.msra.mxu0 0
        %931 = vmatprep.subr.bf16.mxu0 0
        %932 = vmatpush1.bf16.msra.mxu0 0
        %933 = vmatprep.subr.bf16.mxu0 0
        %934 = vmatpush1.bf16.msra.mxu0 0
        %935 = vmatprep.subr.bf16.mxu0 0
        %936 = vmatpush1.bf16.msra.mxu0 %v919
        %937 = vmatprep.subr.bf16.mxu0 0
        %938 = vmatpush2.bf16.msra.mxu0 0
        %939 = vmatprep.subr.bf16.mxu0 0
        %940 = vmatpush2.bf16.msra.mxu0 0
        %941 = vmatprep.subr.bf16.mxu0 0
        %942 = vmatpush2.bf16.msra.mxu0 0
        %943 = vmatprep.subr.bf16.mxu0 0
        %944 = vmatpush2.bf16.msra.mxu0 0
        %945 = vmatprep.subr.bf16.mxu0 0
        %946 = vmatpush2.bf16.msra.mxu0 0
        %947 = vmatprep.subr.bf16.mxu0 0
        %948 = vmatpush2.bf16.msra.mxu0 0
        %949 = vmatprep.subr.bf16.mxu0 0
        %950 = vmatpush2.bf16.msra.mxu0 0
        %951 = vmatprep.subr.bf16.mxu0 0
        %952 = vmatpush2.bf16.msra.mxu0 0
        %953 = vmatprep.mubr.bf16.mxu0 0
        %954 = vmatmul.mubr.bf16.gmra.mxu0 %v916
        %v955 = vpop.f32.mrf.mxu0
        %v956 = vadd.f32 0.0, %v955
        %v957 = vpop.f32.mrf.mxu0
        %v958 = vpop.f32.mrf.mxu0
        %v959 = vpop.f32.mrf.mxu0
        %960 = vdwg.mxu0
        %962 = vrot.lane.b32.xlu0 %v734, 8
        %v963 = vpop.permute.xlu0 %962
        %966 = vrot.lane.b32.xlu0 %v845, 16
        %v967 = vpop.permute.xlu0 %966
        %970 = vrot.lane.b32.xlu0 %v956, 24
        %v971 = vpop.permute.xlu0 %970
        %v973 = vsel %vm517, %v622, %v963
        %vm974 = vcmask 130048
        %v975 = vsel %vm974, %v973, %v967
        %vm976 = vcmask 195584
        %v977 = vsel %vm976, %v975, %v971
        %v978 = vpack.c.bf16 %v977, %v977
        %v979 = vld [vmem:[#allocation10] sm:$0xf]
        %v980 = vld [vmem:[#allocation10 + $0x4] sm:$0xf]
        %v981 = vld [vmem:[#allocation10 + $0x8] sm:$0xf]
        %v982 = vld [vmem:[#allocation10 + $0xc] sm:$0xf]
        %v983 = vld [vmem:[%s7] sm:$0x1]
        %v985 = vlaneseq
        %v986 = vshrl.u32 %v985, 7
        %v987 = vsub.s32 0, %v986
        %v988 = vrot.slane %v983, %v987
        %v994 = vunpack.c.l.b16 %v979
        %v995 = vunpack.c.l.b16 %v980
        %v996 = vunpack.c.l.b16 %v981
        %v997 = vunpack.c.l.b16 %v982
        %v998 = vpack.c.b16 %v995, %v994
        %v999 = vpack.c.b16 %v997, %v996
        %v1003 = vsel %vm405, %v978, 0
        %1005 = vmatprep.subr.bf16.mxu0 0
        %1006 = vmatpush1.bf16.msra.mxu0 0
        %1007 = vmatprep.subr.bf16.mxu0 0
        %1008 = vmatpush1.bf16.msra.mxu0 0
        %1009 = vmatprep.subr.bf16.mxu0 0
        %1010 = vmatpush1.bf16.msra.mxu0 0
        %1011 = vmatprep.subr.bf16.mxu0 0
        %1012 = vmatpush1.bf16.msra.mxu0 0
        %1013 = vmatprep.subr.bf16.mxu0 0
        %1014 = vmatpush1.bf16.msra.mxu0 0
        %1015 = vmatprep.subr.bf16.mxu0 0
        %1016 = vmatpush1.bf16.msra.mxu0 0
        %1017 = vmatprep.subr.bf16.mxu0 0
        %1018 = vmatpush1.bf16.msra.mxu0 %v999
        %1019 = vmatprep.subr.bf16.mxu0 0
        %1020 = vmatpush1.bf16.msra.mxu0 %v998
        %1021 = vmatprep.subr.bf16.mxu0 0
        %1022 = vmatpush2.bf16.msra.mxu0 0
        %1023 = vmatprep.subr.bf16.mxu0 0
        %1024 = vmatpush2.bf16.msra.mxu0 0
        %1025 = vmatprep.subr.bf16.mxu0 0
        %1026 = vmatpush2.bf16.msra.mxu0 0
        %1027 = vmatprep.subr.bf16.mxu0 0
        %1028 = vmatpush2.bf16.msra.mxu0 0
        %1029 = vmatprep.subr.bf16.mxu0 0
        %1030 = vmatpush2.bf16.msra.mxu0 0
        %1031 = vmatprep.subr.bf16.mxu0 0
        %1032 = vmatpush2.bf16.msra.mxu0 0
        %1033 = vmatprep.subr.bf16.mxu0 0
        %1034 = vmatpush2.bf16.msra.mxu0 0
        %1035 = vmatprep.subr.bf16.mxu0 0
        %1036 = vmatpush2.bf16.msra.mxu0 0
        %1037 = vmatprep.mubr.bf16.mxu0 0
        %1038 = vmatmul.mubr.bf16.gmra.mxu0 %v1003
        %v1039 = vpop.f32.mrf.mxu0
        %v1040 = vadd.f32 %v988, %v1039
        %v1041 = vpop.f32.mrf.mxu0
        %v1042 = vpop.f32.mrf.mxu0
        %v1043 = vpop.f32.mrf.mxu0
        %1044 = vdwg.mxu0
        %v1045 = vpack.c.bf16 %v1040, %v1040
        %vm1046 = vcmask 257024
        %1047 = vst.msk [vmem:[%s376] sm:$0xf] %vm1046, %v1045
        %s1048 = sand.u32 %s208, 1
        %s1049 = scalar_lea.sflag [#allocation4], %s1048
        %s1050 = sand.u32 %s208, 1
        %s1051 = smul.addr %s1050, 4
        %s1052 = scalar_lea.vmem [#allocation11], %s1051
        // Predicated region
        $region73: #{tpu_custom_call.1} parent=51 // pred_check
          %p1053 = pneg %p218
        $region74: #{tpu_custom_call.1} parent=51 // pred_check_branch
          %1055 = sbr.rel (%p1053) target = $region76
        $region75: #{tpu_custom_call.1} parent=51 // pred_region
          %s1057 = ssub.s32 64, 64
          %1058 = vsyncadd %s1049, %s1057
          %s1059 = smul.addr %s27, 64
          %s1060 = scalar_lea.hbm %s8, %s1059
          %s1062 = sshll.u32 %s1052, 4
          %s1063 = int_to_ptr.vmem [resolvable:$true] %s1062
          %1065 = dma.vmem_to_hbm [thread:$0]  %s1063, 64, %s1060, %s1049
        $region76: #{tpu_custom_call.1} parent=51 // pred_fallthru
          _
      $region52: #{tpu_custom_call.1} parent=5 // pred_fallthru
        _
      %p1066 = scmp.le.s32.totalorder 2, %s22
      // Predicated region
      $region77: #{tpu_custom_call.1} parent=5 // pred_check
        %p1067 = pneg %p1066
      $region78: #{tpu_custom_call.1} parent=5 // pred_check_branch
        %1069 = sbr.rel (%p1067) target = $region80
      $region79: #{tpu_custom_call.1} parent=5 // pred_region
        %s1070 = ssub.s32 %s22, 2
        // Predicated region
        $region81: #{tpu_custom_call.1} parent=79 // pred_check
          %p1071 = pneg %p224
        $region82: #{tpu_custom_call.1} parent=79 // pred_check_branch
          %1073 = sbr.rel (%p1071) target = $region84
        $region83: #{tpu_custom_call.1} parent=79 // pred_region
          %s1074 = sand.u32 %s209, 1
          %s1075 = scalar_lea.sflag [#allocation4], %s1074
          %s1076 = sand.u32 %s209, 1
          %s1077 = smul.addr %s1076, 4
          %s1078 = scalar_lea.vmem [#allocation11], %s1077
          %1079 = dma.done %s1075, 64
        $region84: #{tpu_custom_call.1} parent=79 // pred_fallthru
          _
      $region80: #{tpu_custom_call.1} parent=5 // pred_fallthru
        _
    $region6: #{tpu_custom_call.1} parent=1 // loop_footer
      %s26 = sadd.s32 1, %s22
    $region7: #{tpu_custom_call.1} parent=1 // loop_footer_branch
      %21 = sbr.rel target = $region3
    $region8: #{tpu_custom_call.1} parent=1 // loop_exit
      _
    %1080 = vsyncpa [#allocation3], 1
    %s1081 = scalar_lea.sflag [#allocation3], 1
    %1082 = vsyncpa %s1081, 1
    %1083 = vsyncpa [#allocation6], 1
    %s1084 = scalar_lea.sflag [#allocation6], 1
    %1085 = vsyncpa %s1084, 1
    %1086 = vsyncpa [#allocation9], 1
    %1087 = vsyncpa [#allocation4], 1
    %s1088 = scalar_lea.sflag [#allocation4], 1
    %1089 = vsyncpa %s1088, 1

// kernel: tpu_custom_call.1
$region0: #{tpu_custom_call.1}
  #allocation0 [shape = 'u32[]', space=smem, size = 0x4, offset = 0x4, fixed_abs, tag = 'smem constant byte address 0x4 - core index']
  #allocation1 [shape = 'u32[144,128]{1,0:T(1,128)}', space=vmem, size = 0x12000, scoped, tag = 'internal scratch']
  %s0 = inlined_call_operand.hbm [shape: f32[1,8,32], index: 0, kind: input, shape index: {}]
  %s1 = inlined_call_operand.hbm [shape: f32[2,8,32], index: 1, kind: input, shape index: {}]
  %s2 = inlined_call_operand.hbm [shape: bf16[32,32], index: 2, kind: input, shape index: {}]
  %s3 = inlined_call_operand.vmem [shape: f32[1,32], index: 3, kind: input, shape index: {}]
  %s4 = inlined_call_operand.hbm [shape: bf16[32,64], index: 4, kind: input, shape index: {}]
  %s5 = inlined_call_operand.vmem [shape: f32[1,64], index: 5, kind: input, shape index: {}]
  %s6 = inlined_call_operand.hbm [shape: bf16[32,32], index: 6, kind: input, shape index: {}]
  %s7 = inlined_call_operand.vmem [shape: f32[1,32], index: 7, kind: input, shape index: {}]
  %s8 = inlined_call_operand.hbm [shape: bf16[2,8,32], index: 8, kind: output, shape index: {}]
  %s9 = sld [smem:[#allocation0]]
  $region85: #{tpu_custom_call.1} parent=0
    _
  %s11 = ssub.s32 1, %s9
  %s12 = scalar_select 0, %s11, %s9
  $region1: #{tpu_custom_call.1} parent=0
    #allocation2 [shape = 'u8[4096]{0}', space=vmem, size = 0x1000, scoped, tag = 'input window, operand 0, single buffered']
    #allocation3 [shape = 's32[2]{0}', space=sflag, size = 0x8, scoped, tag = 'scoped memory for tpu_custom_call.1']
    #allocation4 [shape = 's32[2]{0}', space=sflag, size = 0x8, scoped, tag = 'scoped memory for tpu_custom_call.1']
    #allocation5 [shape = 'u8[8192]{0}', space=vmem, size = 0x2000, scoped, tag = 'input window, operand 1']
    #allocation6 [shape = 's32[2]{0}', space=sflag, size = 0x8, scoped, tag = 'scoped memory for tpu_custom_call.1']
    #allocation7 [shape = 'u8[8192]{0}', space=vmem, size = 0x2000, scoped, tag = 'input window, operand 2, single buffered']
    #allocation8 [shape = 'u8[8192]{0}', space=vmem, size = 0x2000, scoped, tag = 'input window, operand 4, single buffered']
    #allocation9 [shape = 's32[1]{0}', space=sflag, size = 0x4, scoped, tag = 'scoped memory for tpu_custom_call.1']
    #allocation10 [shape = 'u8[8192]{0}', space=vmem, size = 0x2000, scoped, tag = 'input window, operand 6, single buffered']
    #allocation11 [shape = 'u8[4096]{0}', space=vmem, size = 0x1000, scoped, tag = 'output window, operand 0']
    %13 = vsyncpa [#allocation3], 0
    %14 = vsyncpa [#allocation6], 0
    %s15 = scalar_lea.sflag [#allocation6], 1
    %16 = vsyncpa %s15, 0
    %17 = vsyncpa [#allocation9], 0
    %18 = vsyncpa [#allocation4], 0
    %s19 = scalar_lea.sflag [#allocation4], 1
    %20 = vsyncpa %s19, 0
    loop: start=0, step=1, limit=4
    $region2: #{tpu_custom_call.1} parent=1 // loop_pre_header
      _
    $region3: #{tpu_custom_call.1} parent=1 // loop_header
      %s22 = sphi 0, %s26
      %p23 = scmp.ge.s32.totalorder %s22, 4
      %s30 = sphi 0, %s30
      %s32 = sphi 0, %s30
      %s33 = sphi 0, %s32
      %s47 = sphi 0, %s33
      %s53 = sphi 0, %s55
      %s56 = sphi 0, %s53
      %s57 = sphi 0, %s56
      %s73 = sphi 0, %s57
      %s77 = sphi 0, %s77
      %s79 = sphi 0, %s77
      %s80 = sphi 0, %s79
      %s94 = sphi 0, %s80
      %s98 = sphi 0, %s98
      %s100 = sphi 0, %s98
      %s101 = sphi 0, %s100
      %s115 = sphi 0, %s101
      %s119 = sphi 0, %s119
      %s121 = sphi 0, %s119
      %s122 = sphi 0, %s121
      %s136 = sphi 0, %s122
      %s140 = sphi 0, %s140
      %s142 = sphi 0, %s140
      %s143 = sphi 0, %s142
      %s157 = sphi 0, %s143
      %s161 = sphi 0, %s161
      %s163 = sphi 0, %s161
      %s164 = sphi 0, %s163
      %s178 = sphi 0, %s164
      %s182 = sphi 0, %s182
      %s184 = sphi 0, %s182
      %s185 = sphi 0, %s184
      %s199 = sphi 0, %s185
      %s205 = sphi 0, %s207
      %s208 = sphi 0, %s205
      %s209 = sphi 0, %s208
      %s225 = sphi 0, %s209
    $region4: #{tpu_custom_call.1} parent=1 // loop_header_branch
      %25 = sbr.rel (%p23) target = $region8
    $region5: #{tpu_custom_call.1} parent=1 // loop_body
      %s27 = ssub.s32 %s22, 1
      %s28 = ssub.s32 %s22, 2
      %s29 = sadd.s32 %s22, 1
      %s31 = sadd.s32 %s30, 1
      %p34 = scmp.eq.s32.totalorder %s22, 1
      %p35 = scmp.ne.s32.totalorder %s30, %s32
      %p36 = scmp.eq.s32.totalorder %s22, 0
      %p37 = por %p35, %p36
      %p38 = scmp.ne.s32.totalorder %s30, %s32
      %p39 = scmp.eq.s32.totalorder %s27, 1
      %p40 = por %p38, %p39
      %p41 = scmp.ne.s32.totalorder %s32, %s33
      %p42 = scmp.eq.s32.totalorder %s27, 0
      %p43 = por %p41, %p42
      %p44 = scmp.ne.s32.totalorder %s32, %s33
      %p45 = scmp.eq.s32.totalorder %s28, 1
      %p46 = por %p44, %p45
      %p48 = scmp.ne.s32.totalorder %s33, %s47
      %p49 = scmp.eq.s32.totalorder %s28, 0
      %p50 = por %p48, %p49
      %s51 = ssub.s32 %s22, %s29
      %p52 = scmp.eq.s32.totalorder %s51, 0
      %s54 = sadd.s32 %s53, 1
      %s55 = scalar_select %p52, %s53, %s54
      %p58 = pneg %p52
      %p59 = scmp.eq.s32.totalorder %s22, 1
      %p60 = por %p58, %p59
      %p61 = scmp.ne.s32.totalorder %s53, %s56
      %p62 = scmp.eq.s32.totalorder %s22, 0
      %p63 = por %p61, %p62
      %p64 = scmp.ne.s32.totalorder %s53, %s56
      %p65 = scmp.eq.s32.totalorder %s27, 1
      %p66 = por %p64, %p65
      %p67 = scmp.ne.s32.totalorder %s56, %s57
      %p68 = scmp.eq.s32.totalorder %s27, 0
      %p69 = por %p67, %p68
      %p70 = scmp.ne.s32.totalorder %s56, %s57
      %p71 = scmp.eq.s32.totalorder %s28, 1
      %p72 = por %p70, %p71
      %p74 = scmp.ne.s32.totalorder %s57, %s73
      %p75 = scmp.eq.s32.totalorder %s28, 0
      %p76 = por %p74, %p75
      %s78 = sadd.s32 %s77, 1
      %p81 = scmp.eq.s32.totalorder %s22, 1
      %p82 = scmp.ne.s32.totalorder %s77, %s79
      %p83 = scmp.eq.s32.totalorder %s22, 0
      %p84 = por %p82, %p83
      %p85 = scmp.ne.s32.totalorder %s77, %s79
      %p86 = scmp.eq.s32.totalorder %s27, 1
      %p87 = por %p85, %p86
      %p88 = scmp.ne.s32.totalorder %s79, %s80
      %p89 = scmp.eq.s32.totalorder %s27, 0
      %p90 = por %p88, %p89
      %p91 = scmp.ne.s32.totalorder %s79, %s80
      %p92 = scmp.eq.s32.totalorder %s28, 1
      %p93 = por %p91, %p92
      %p95 = scmp.ne.s32.totalorder %s80, %s94
      %p96 = scmp.eq.s32.totalorder %s28, 0
      %p97 = por %p95, %p96
      %s99 = sadd.s32 %s98, 1
      %p102 = scmp.eq.s32.totalorder %s22, 1
      %p103 = scmp.ne.s32.totalorder %s98, %s100
      %p104 = scmp.eq.s32.totalorder %s22, 0
      %p105 = por %p103, %p104
      %p106 = scmp.ne.s32.totalorder %s98, %s100
      %p107 = scmp.eq.s32.totalorder %s27, 1
      %p108 = por %p106, %p107
      %p109 = scmp.ne.s32.totalorder %s100, %s101
      %p110 = scmp.eq.s32.totalorder %s27, 0
      %p111 = por %p109, %p110
      %p112 = scmp.ne.s32.totalorder %s100, %s101
      %p113 = scmp.eq.s32.totalorder %s28, 1
      %p114 = por %p112, %p113
      %p116 = scmp.ne.s32.totalorder %s101, %s115
      %p117 = scmp.eq.s32.totalorder %s28, 0
      %p118 = por %p116, %p117
      %s120 = sadd.s32 %s119, 1
      %p123 = scmp.eq.s32.totalorder %s22, 1
      %p124 = scmp.ne.s32.totalorder %s119, %s121
      %p125 = scmp.eq.s32.totalorder %s22, 0
      %p126 = por %p124, %p125
      %p127 = scmp.ne.s32.totalorder %s119, %s121
      %p128 = scmp.eq.s32.totalorder %s27, 1
      %p129 = por %p127, %p128
      %p130 = scmp.ne.s32.totalorder %s121, %s122
      %p131 = scmp.eq.s32.totalorder %s27, 0
      %p132 = por %p130, %p131
      %p133 = scmp.ne.s32.totalorder %s121, %s122
      %p134 = scmp.eq.s32.totalorder %s28, 1
      %p135 = por %p133, %p134
      %p137 = scmp.ne.s32.totalorder %s122, %s136
      %p138 = scmp.eq.s32.totalorder %s28, 0
      %p139 = por %p137, %p138
      %s141 = sadd.s32 %s140, 1
      %p144 = scmp.eq.s32.totalorder %s22, 1
      %p145 = scmp.ne.s32.totalorder %s140, %s142
      %p146 = scmp.eq.s32.totalorder %s22, 0
      %p147 = por %p145, %p146
      %p148 = scmp.ne.s32.totalorder %s140, %s142
      %p149 = scmp.eq.s32.totalorder %s27, 1
      %p150 = por %p148, %p149
      %p151 = scmp.ne.s32.totalorder %s142, %s143
      %p152 = scmp.eq.s32.totalorder %s27, 0
      %p153 = por %p151, %p152
      %p154 = scmp.ne.s32.totalorder %s142, %s143
      %p155 = scmp.eq.s32.totalorder %s28, 1
      %p156 = por %p154, %p155
      %p158 = scmp.ne.s32.totalorder %s143, %s157
      %p159 = scmp.eq.s32.totalorder %s28, 0
      %p160 = por %p158, %p159
      %s162 = sadd.s32 %s161, 1
      %p165 = scmp.eq.s32.totalorder %s22, 1
      %p166 = scmp.ne.s32.totalorder %s161, %s163
      %p167 = scmp.eq.s32.totalorder %s22, 0
      %p168 = por %p166, %p167
      %p169 = scmp.ne.s32.totalorder %s161, %s163
      %p170 = scmp.eq.s32.totalorder %s27, 1
      %p171 = por %p169, %p170
      %p172 = scmp.ne.s32.totalorder %s163, %s164
      %p173 = scmp.eq.s32.totalorder %s27, 0
      %p174 = por %p172, %p173
      %p175 = scmp.ne.s32.totalorder %s163, %s164
      %p176 = scmp.eq.s32.totalorder %s28, 1
      %p177 = por %p175, %p176
      %p179 = scmp.ne.s32.totalorder %s164, %s178
      %p180 = scmp.eq.s32.totalorder %s28, 0
      %p181 = por %p179, %p180
      %s183 = sadd.s32 %s182, 1
      %p186 = scmp.eq.s32.totalorder %s22, 1
      %p187 = scmp.ne.s32.totalorder %s182, %s184
      %p188 = scmp.eq.s32.totalorder %s22, 0
      %p189 = por %p187, %p188
      %p190 = scmp.ne.s32.totalorder %s182, %s184
      %p191 = scmp.eq.s32.totalorder %s27, 1
      %p192 = por %p190, %p191
      %p193 = scmp.ne.s32.totalorder %s184, %s185
      %p194 = scmp.eq.s32.totalorder %s27, 0
      %p195 = por %p193, %p194
      %p196 = scmp.ne.s32.totalorder %s184, %s185
      %p197 = scmp.eq.s32.totalorder %s28, 1
      %p198 = por %p196, %p197
      %p200 = scmp.ne.s32.totalorder %s185, %s199
      %p201 = scmp.eq.s32.totalorder %s28, 0
      %p202 = por %p200, %p201
      %s203 = ssub.s32 %s22, %s29
      %p204 = scmp.eq.s32.totalorder %s203, 0
      %s206 = sadd.s32 %s205, 1
      %s207 = scalar_select %p204, %s205, %s206
      %p210 = pneg %p204
      %p211 = scmp.eq.s32.totalorder %s22, 1
      %p212 = por %p210, %p211
      %p213 = scmp.ne.s32.totalorder %s205, %s208
      %p214 = scmp.eq.s32.totalorder %s22, 0
      %p215 = por %p213, %p214
      %p216 = scmp.ne.s32.totalorder %s205, %s208
      %p217 = scmp.eq.s32.totalorder %s27, 1
      %p218 = por %p216, %p217
      %p219 = scmp.ne.s32.totalorder %s208, %s209
      %p220 = scmp.eq.s32.totalorder %s27, 0
      %p221 = por %p219, %p220
      %p222 = scmp.ne.s32.totalorder %s208, %s209
      %p223 = scmp.eq.s32.totalorder %s28, 1
      %p224 = por %p222, %p223
      %p226 = scmp.ne.s32.totalorder %s209, %s225
      %p227 = scmp.eq.s32.totalorder %s28, 0
      %p228 = por %p226, %p227
      %p229 = scmp.le.s32.totalorder 1, %s22
      %p230 = scmp.lt.s32.totalorder %s22, 3
      %p231 = pnand %p229, %p230
      %p232 = pneg %p231
      // Predicated region
      $region9: #{tpu_custom_call.1} parent=5 // pred_check
        _
      $region10: #{tpu_custom_call.1} parent=5 // pred_check_branch
        %234 = sbr.rel (%p231) target = $region12
      $region11: #{tpu_custom_call.1} parent=5 // pred_region
        %s235 = ssub.s32 %s22, 1
        // Predicated region
        $region13: #{tpu_custom_call.1} parent=11 // pred_check
          %p236 = pneg %p43
        $region14: #{tpu_custom_call.1} parent=11 // pred_check_branch
          %238 = sbr.rel (%p236) target = $region16
        $region15: #{tpu_custom_call.1} parent=11 // pred_region
          %s240 = ssub.s32 128, 128
          %241 = vsyncadd [#allocation3], %s240
          %s243 = sshll.u32 [#allocation2], 4
          %s244 = int_to_ptr.vmem [resolvable:$true] %s243
          %246 = dma.hbm_to_vmem [thread:$0]  %s0, 128, %s244, [#allocation3]
        $region16: #{tpu_custom_call.1} parent=11 // pred_fallthru
          _
        // Predicated region
        $region17: #{tpu_custom_call.1} parent=11 // pred_check
          %p247 = pneg %p90
        $region18: #{tpu_custom_call.1} parent=11 // pred_check_branch
          %249 = sbr.rel (%p247) target = $region20
        $region19: #{tpu_custom_call.1} parent=11 // pred_region
          %s251 = ssub.s32 256, 256
          %252 = vsyncadd [#allocation6], %s251
          %s253 = sshll.u32 [#allocation7], 4
          %s254 = int_to_ptr.vmem [resolvable:$true] %s253
          %259 = dma.hbm_to_vmem [thread:$0]  %s2, 256, %s254, [#allocation6], 64, 64, 4
        $region20: #{tpu_custom_call.1} parent=11 // pred_fallthru
          _
        // Predicated region
        $region21: #{tpu_custom_call.1} parent=11 // pred_check
          %p260 = pneg %p111
        $region22: #{tpu_custom_call.1} parent=11 // pred_check_branch
          %262 = sbr.rel (%p260) target = $region24
        $region23: #{tpu_custom_call.1} parent=11 // pred_region
          _
        $region24: #{tpu_custom_call.1} parent=11 // pred_fallthru
          _
        // Predicated region
        $region25: #{tpu_custom_call.1} parent=11 // pred_check
          %p263 = pneg %p132
        $region26: #{tpu_custom_call.1} parent=11 // pred_check_branch
          %265 = sbr.rel (%p263) target = $region28
        $region27: #{tpu_custom_call.1} parent=11 // pred_region
          %s267 = ssub.s32 256, 256
          %268 = vsyncadd [#allocation9], %s267
          %s269 = sshll.u32 [#allocation8], 4
          %s270 = int_to_ptr.vmem [resolvable:$true] %s269
          %275 = dma.hbm_to_vmem [thread:$0]  %s4, 256, %s270, [#allocation9], 64, 64, 4
        $region28: #{tpu_custom_call.1} parent=11 // pred_fallthru
          _
        // Predicated region
        $region29: #{tpu_custom_call.1} parent=11 // pred_check
          %p276 = pneg %p153
        $region30: #{tpu_custom_call.1} parent=11 // pred_check_branch
          %278 = sbr.rel (%p276) target = $region32
        $region31: #{tpu_custom_call.1} parent=11 // pred_region
          _
        $region32: #{tpu_custom_call.1} parent=11 // pred_fallthru
          _
        // Predicated region
        $region33: #{tpu_custom_call.1} parent=11 // pred_check
          %p279 = pneg %p174
        $region34: #{tpu_custom_call.1} parent=11 // pred_check_branch
          %281 = sbr.rel (%p279) target = $region36
        $region35: #{tpu_custom_call.1} parent=11 // pred_region
          %s283 = ssub.s32 256, 256
          %284 = vsyncadd [#allocation9], %s283
          %s285 = sshll.u32 [#allocation10], 4
          %s286 = int_to_ptr.vmem [resolvable:$true] %s285
          %291 = dma.hbm_to_vmem [thread:$0]  %s6, 256, %s286, [#allocation9], 64, 64, 4
        $region36: #{tpu_custom_call.1} parent=11 // pred_fallthru
          _
        // Predicated region
        $region37: #{tpu_custom_call.1} parent=11 // pred_check
          %p292 = pneg %p195
        $region38: #{tpu_custom_call.1} parent=11 // pred_check_branch
          %294 = sbr.rel (%p292) target = $region40
        $region39: #{tpu_custom_call.1} parent=11 // pred_region
          _
        $region40: #{tpu_custom_call.1} parent=11 // pred_fallthru
          _
      $region12: #{tpu_custom_call.1} parent=5 // pred_fallthru
        _
      %p295 = scmp.lt.s32.totalorder %s22, 2
      // Predicated region
      $region41: #{tpu_custom_call.1} parent=5 // pred_check
        %p296 = pneg %p295
      $region42: #{tpu_custom_call.1} parent=5 // pred_check_branch
        %298 = sbr.rel (%p296) target = $region44
      $region43: #{tpu_custom_call.1} parent=5 // pred_region
        // Predicated region
        $region45: #{tpu_custom_call.1} parent=43 // pred_check
          %p299 = pneg %p63
        $region46: #{tpu_custom_call.1} parent=43 // pred_check_branch
          %301 = sbr.rel (%p299) target = $region48
        $region47: #{tpu_custom_call.1} parent=43 // pred_region
          %s302 = sand.u32 %s22, 1
          %s303 = scalar_lea.sflag [#allocation6], %s302
          %s304 = sand.u32 %s53, 1
          %s305 = smul.addr %s304, 8
          %s306 = scalar_lea.vmem [#allocation5], %s305
          %s308 = ssub.s32 128, 128
          %309 = vsyncadd %s303, %s308
          %s310 = smul.addr %s22, 128
          %s311 = scalar_lea.hbm %s1, %s310
          %s313 = sshll.u32 %s306, 4
          %s314 = int_to_ptr.vmem [resolvable:$true] %s313
          %316 = dma.hbm_to_vmem [thread:$0]  %s311, 128, %s314, %s303
        $region48: #{tpu_custom_call.1} parent=43 // pred_fallthru
          _
      $region44: #{tpu_custom_call.1} parent=5 // pred_fallthru
        _
      %p317 = scmp.le.s32.totalorder 1, %s22
      %p318 = scmp.lt.s32.totalorder %s22, 3
      %p319 = pnand %p317, %p318
      %p320 = pneg %p319
      // Predicated region
      $region49: #{tpu_custom_call.1} parent=5 // pred_check
        _
      $region50: #{tpu_custom_call.1} parent=5 // pred_check_branch
        %322 = sbr.rel (%p319) target = $region52
      $region51: #{tpu_custom_call.1} parent=5 // pred_region
        %s323 = ssub.s32 %s22, 1
        // Predicated region
        $region53: #{tpu_custom_call.1} parent=51 // pred_check
          %p324 = pneg %p43
        $region54: #{tpu_custom_call.1} parent=51 // pred_check_branch
          %326 = sbr.rel (%p324) target = $region56
        $region55: #{tpu_custom_call.1} parent=51 // pred_region
          %327 = dma.done [#allocation3], 128
        $region56: #{tpu_custom_call.1} parent=51 // pred_fallthru
          _
        %s328 = sand.u32 %s27, 1
        %s329 = scalar_lea.sflag [#allocation6], %s328
        %s330 = sand.u32 %s56, 1
        %s331 = smul.addr %s330, 8
        %s332 = scalar_lea.vmem [#allocation5], %s331
        // Predicated region
        $region57: #{tpu_custom_call.1} parent=51 // pred_check
          %p333 = pneg %p69
        $region58: #{tpu_custom_call.1} parent=51 // pred_check_branch
          %335 = sbr.rel (%p333) target = $region60
        $region59: #{tpu_custom_call.1} parent=51 // pred_region
          %336 = dma.done %s329, 128
        $region60: #{tpu_custom_call.1} parent=51 // pred_fallthru
          _
        // Predicated region
        $region61: #{tpu_custom_call.1} parent=51 // pred_check
          %p337 = pneg %p90
        $region62: #{tpu_custom_call.1} parent=51 // pred_check_branch
          %339 = sbr.rel (%p337) target = $region64
        $region63: #{tpu_custom_call.1} parent=51 // pred_region
          %340 = dma.done [#allocation6], 256
        $region64: #{tpu_custom_call.1} parent=51 // pred_fallthru
          _
        // Predicated region
        $region65: #{tpu_custom_call.1} parent=51 // pred_check
          %p341 = pneg %p132
        $region66: #{tpu_custom_call.1} parent=51 // pred_check_branch
          %343 = sbr.rel (%p341) target = $region68
        $region67: #{tpu_custom_call.1} parent=51 // pred_region
          %344 = dma.done [#allocation9], 256
        $region68: #{tpu_custom_call.1} parent=51 // pred_fallthru
          _
        // Predicated region
        $region69: #{tpu_custom_call.1} parent=51 // pred_check
          %p345 = pneg %p174
        $region70: #{tpu_custom_call.1} parent=51 // pred_check_branch
          %347 = sbr.rel (%p345) target = $region72
        $region71: #{tpu_custom_call.1} parent=51 // pred_region
          %348 = dma.done [#allocation9], 256
        $region72: #{tpu_custom_call.1} parent=51 // pred_fallthru
          _
        %p349 = pneg %p43
        %p350 = pneg %p40
        %s351 = sand.u32 %s27, 1
        %s352 = scalar_lea.sflag [#allocation6], %s351
        %s353 = sand.u32 %s56, 1
        %s354 = smul.addr %s353, 8
        %s355 = scalar_lea.vmem [#allocation5], %s354
        %p356 = pneg %p69
        %p357 = pneg %p66
        %p358 = pneg %p90
        %p359 = pneg %p87
        %p360 = pneg %p111
        %p361 = pneg %p108
        %p362 = pneg %p132
        %p363 = pneg %p129
        %p364 = pneg %p153
        %p365 = pneg %p150
        %p366 = pneg %p174
        %p367 = pneg %p171
        %p368 = pneg %p195
        %p369 = pneg %p192
        %p370 = pneg %p221
        %p371 = pneg %p218
        %s372 = sand.u32 %s208, 1
        %s373 = scalar_lea.sflag [#allocation4], %s372
        %s374 = sand.u32 %s208, 1
        %s375 = smul.addr %s374, 4
        %s376 = scalar_lea.vmem [#allocation11], %s375
        %v378 = vld [vmem:[#allocation2] sm:$0xff]
        %v379 = vpack.c.bf16 %v378, %v378
        %v380 = vld [vmem:[%s332] sm:$0xff]
        %v381 = vpack.c.bf16 %v380, %v380
        %v382 = vld [vmem:[#allocation7] sm:$0xf]
        %v383 = vld [vmem:[#allocation7 + $0x4] sm:$0xf]
        %v384 = vld [vmem:[#allocation7 + $0x8] sm:$0xf]
        %v385 = vld [vmem:[#allocation7 + $0xc] sm:$0xf]
        %v386 = vld [vmem:[%s3] sm:$0x1]
        %v388 = vlaneseq
        %v389 = vshrl.u32 %v388, 7
        %v390 = vsub.s32 0, %v389
        %v391 = vrot.slane %v386, %v390
        %v397 = vunpack.c.l.b16 %v382
        %v398 = vunpack.c.l.b16 %v383
        %v399 = vunpack.c.l.b16 %v384
        %v400 = vunpack.c.l.b16 %v385
        %v401 = vpack.c.b16 %v398, %v397
        %v402 = vpack.c.b16 %v400, %v399
        %vm405 = vcmask 261120
        %v407 = vsel %vm405, %v379, 0
        %409 = vmatprep.subr.bf16.mxu0 0
        %410 = vmatpush1.bf16.msra.mxu0 0
        %411 = vmatprep.subr.bf16.mxu0 0
        %412 = vmatpush1.bf16.msra.mxu0 0
        %413 = vmatprep.subr.bf16.mxu0 0
        %414 = vmatpush1.bf16.msra.mxu0 0
        %415 = vmatprep.subr.bf16.mxu0 0
        %416 = vmatpush1.bf16.msra.mxu0 0
        %417 = vmatprep.subr.bf16.mxu0 0
        %418 = vmatpush1.bf16.msra.mxu0 0
        %419 = vmatprep.subr.bf16.mxu0 0
        %420 = vmatpush1.bf16.msra.mxu0 0
        %421 = vmatprep.subr.bf16.mxu0 0
        %422 = vmatpush1.bf16.msra.mxu0 %v402
        %423 = vmatprep.subr.bf16.mxu0 0
        %424 = vmatpush1.bf16.msra.mxu0 %v401
        %425 = vmatprep.subr.bf16.mxu0 0
        %426 = vmatpush2.bf16.msra.mxu0 0
        %427 = vmatprep.subr.bf16.mxu0 0
        %428 = vmatpush2.bf16.msra.mxu0 0
        %429 = vmatprep.subr.bf16.mxu0 0
        %430 = vmatpush2.bf16.msra.mxu0 0
        %431 = vmatprep.subr.bf16.mxu0 0
        %432 = vmatpush2.bf16.msra.mxu0 0
        %433 = vmatprep.subr.bf16.mxu0 0
        %434 = vmatpush2.bf16.msra.mxu0 0
        %435 = vmatprep.subr.bf16.mxu0 0
        %436 = vmatpush2.bf16.msra.mxu0 0
        %437 = vmatprep.subr.bf16.mxu0 0
        %438 = vmatpush2.bf16.msra.mxu0 0
        %439 = vmatprep.subr.bf16.mxu0 0
        %440 = vmatpush2.bf16.msra.mxu0 0
        %441 = vmatprep.mubr.bf16.mxu0 0
        %442 = vmatmul.mubr.bf16.gmra.mxu0 %v407
        %v443 = vpop.f32.mrf.mxu0
        %v444 = vadd.f32 %v391, %v443
        %v445 = vpop.f32.mrf.mxu0
        %v446 = vpop.f32.mrf.mxu0
        %v447 = vpop.f32.mrf.mxu0
        %448 = vdwg.mxu0
        %v449 = vld [vmem:[#allocation8] sm:$0xf]
        %v450 = vld [vmem:[#allocation8 + $0x4] sm:$0xf]
        %v451 = vld [vmem:[#allocation8 + $0x8] sm:$0xf]
        %v452 = vld [vmem:[#allocation8 + $0xc] sm:$0xf]
        %v453 = vld [vmem:[%s5] sm:$0x1]
        %v455 = vlaneseq
        %v456 = vshrl.u32 %v455, 7
        %v457 = vsub.s32 0, %v456
        %v458 = vrot.slane %v453, %v457
        %v464 = vunpack.c.l.b16 %v449
        %v465 = vunpack.c.l.b16 %v450
        %v466 = vunpack.c.l.b16 %v451
        %v467 = vunpack.c.l.b16 %v452
        %v468 = vpack.c.b16 %v465, %v464
        %v469 = vpack.c.b16 %v467, %v466
        %v473 = vsel %vm405, %v381, 0
        %475 = vmatprep.subr.bf16.mxu0 0
        %476 = vmatpush1.bf16.msra.mxu0 0
        %477 = vmatprep.subr.bf16.mxu0 0
        %478 = vmatpush1.bf16.msra.mxu0 0
        %479 = vmatprep.subr.bf16.mxu0 0
        %480 = vmatpush1.bf16.msra.mxu0 0
        %481 = vmatprep.subr.bf16.mxu0 0
        %482 = vmatpush1.bf16.msra.mxu0 0
        %483 = vmatprep.subr.bf16.mxu0 0
        %484 = vmatpush1.bf16.msra.mxu0 0
        %485 = vmatprep.subr.bf16.mxu0 0
        %486 = vmatpush1.bf16.msra.mxu0 0
        %487 = vmatprep.subr.bf16.mxu0 0
        %488 = vmatpush1.bf16.msra.mxu0 %v469
        %489 = vmatprep.subr.bf16.mxu0 0
        %490 = vmatpush1.bf16.msra.mxu0 %v468
        %491 = vmatprep.subr.bf16.mxu0 0
        %492 = vmatpush2.bf16.msra.mxu0 0
        %493 = vmatprep.subr.bf16.mxu0 0
        %494 = vmatpush2.bf16.msra.mxu0 0
        %495 = vmatprep.subr.bf16.mxu0 0
        %496 = vmatpush2.bf16.msra.mxu0 0
        %497 = vmatprep.subr.bf16.mxu0 0
        %498 = vmatpush2.bf16.msra.mxu0 0
        %499 = vmatprep.subr.bf16.mxu0 0
        %500 = vmatpush2.bf16.msra.mxu0 0
        %501 = vmatprep.subr.bf16.mxu0 0
        %502 = vmatpush2.bf16.msra.mxu0 0
        %503 = vmatprep.subr.bf16.mxu0 0
        %504 = vmatpush2.bf16.msra.mxu0 0
        %505 = vmatprep.subr.bf16.mxu0 0
        %506 = vmatpush2.bf16.msra.mxu0 0
        %507 = vmatprep.mubr.bf16.mxu0 0
        %508 = vmatmul.mubr.bf16.gmra.mxu0 %v473
        %v509 = vpop.f32.mrf.mxu0
        %v510 = vadd.f32 %v458, %v509
        %v511 = vpop.f32.mrf.mxu0
        %v512 = vpop.f32.mrf.mxu0
        %v513 = vpop.f32.mrf.mxu0
        %514 = vdwg.mxu0
        %v515 = vpack.c.bf16 %v444, %v444
        %v516 = vpack.c.bf16 %v510, %v510
        %vm517 = vcmask 64512
        %v519 = vsel %vm517, %v515, 0
        %v522 = vsel %vm517, %v516, 0
        %524 = vmatprep.subr.bf16.mxu0 0
        %525 = vmatpush1.bf16.xpose.msra.mxu0 0
        %526 = vmatprep.subr.bf16.mxu0 0
        %527 = vmatpush1.bf16.xpose.msra.mxu0 0
        %528 = vmatprep.subr.bf16.mxu0 0
        %529 = vmatpush1.bf16.xpose.msra.mxu0 0
        %530 = vmatprep.subr.bf16.mxu0 0
        %531 = vmatpush1.bf16.xpose.msra.mxu0 0
        %532 = vmatprep.subr.bf16.mxu0 0
        %533 = vmatpush1.bf16.xpose.msra.mxu0 0
        %534 = vmatprep.subr.bf16.mxu0 0
        %535 = vmatpush1.bf16.xpose.msra.mxu0 0
        %536 = vmatprep.subr.bf16.mxu0 0
        %537 = vmatpush1.bf16.xpose.msra.mxu0 0
        %538 = vmatprep.subr.bf16.mxu0 0
        %539 = vmatpush1.bf16.xpose.msra.mxu0 %v522
        %540 = vmatprep.subr.bf16.mxu0 0
        %541 = vmatpush2.bf16.xpose.msra.mxu0 0
        %542 = vmatprep.subr.bf16.mxu0 0
        %543 = vmatpush2.bf16.xpose.msra.mxu0 0
        %544 = vmatprep.subr.bf16.mxu0 0
        %545 = vmatpush2.bf16.xpose.msra.mxu0 0
        %546 = vmatprep.subr.bf16.mxu0 0
        %547 = vmatpush2.bf16.xpose.msra.mxu0 0
        %548 = vmatprep.subr.bf16.mxu0 0
        %549 = vmatpush2.bf16.xpose.msra.mxu0 0
        %550 = vmatprep.subr.bf16.mxu0 0
        %551 = vmatpush2.bf16.xpose.msra.mxu0 0
        %552 = vmatprep.subr.bf16.mxu0 0
        %553 = vmatpush2.bf16.xpose.msra.mxu0 0
        %554 = vmatprep.subr.bf16.mxu0 0
        %555 = vmatpush2.bf16.xpose.msra.mxu0 0
        %556 = vmatprep.mubr.bf16.mxu0 0
        %557 = vmatmul.mubr.bf16.gmra.mxu0 %v519
        %v558 = vpop.f32.mrf.mxu0
        %v559 = vadd.f32 0.0, %v558
        %v560 = vpop.f32.mrf.mxu0
        %v561 = vpop.f32.mrf.mxu0
        %v562 = vpop.f32.mrf.mxu0
        %563 = vdwg.mxu0
        %v564 = vmul.f32 %v559, 0.35355338
        %v565 = vsel %vm517, %v564, -inf
        %566 = vmax.xlane.f32.xlu0 %v565
        %v567 = vpop.xlane.xlu0 %566
        %v568 = vsub.f32 %v564, %v567
        %v569 = vmul.f32 %v568, 1.442695
        %v570 = vpow.pop %v569
        %v571 = vsel %vm517, %v570, 0.0
        %572 = vadd.xlane.f32.xlu0 %v571
        %v573 = vpop.xlane.xlu0 %572
        %v574 = vrcp.pop %v573
        %v575 = vmul.f32 %v570, %v574
        %v576 = vpack.c.bf16 %v575, %v575
        %578 = vrot.lane.b32.xlu0 %v516, 96
        %v579 = vpop.permute.xlu0 %578
        %v581 = vsel %vm517, %v576, 0
        %vm583 = vcmask 1043456
        %v585 = vsel %vm583, %v579, 0
        %587 = vmatprep.subr.bf16.mxu0 0
        %588 = vmatpush1.bf16.msra.mxu0 0
        %589 = vmatprep.subr.bf16.mxu0 0
        %590 = vmatpush1.bf16.msra.mxu0 0
        %591 = vmatprep.subr.bf16.mxu0 0
        %592 = vmatpush1.bf16.msra.mxu0 0
        %593 = vmatprep.subr.bf16.mxu0 0
        %594 = vmatpush1.bf16.msra.mxu0 0
        %595 = vmatprep.subr.bf16.mxu0 0
        %596 = vmatpush1.bf16.msra.mxu0 0
        %597 = vmatprep.subr.bf16.mxu0 0
        %598 = vmatpush1.bf16.msra.mxu0 0
        %599 = vmatprep.subr.bf16.mxu0 0
        %600 = vmatpush1.bf16.msra.mxu0 0
        %601 = vmatprep.subr.bf16.mxu0 0
        %602 = vmatpush1.bf16.msra.mxu0 %v585
        %603 = vmatprep.subr.bf16.mxu0 0
        %604 = vmatpush2.bf16.msra.mxu0 0
        %605 = vmatprep.subr.bf16.mxu0 0
        %606 = vmatpush2.bf16.msra.mxu0 0
        %607 = vmatprep.subr.bf16.mxu0 0
        %608 = vmatpush2.bf16.msra.mxu0 0
        %609 = vmatprep.subr.bf16.mxu0 0
        %610 = vmatpush2.bf16.msra.mxu0 0
        %611 = vmatprep.subr.bf16.mxu0 0
        %612 = vmatpush2.bf16.msra.mxu0 0
        %613 = vmatprep.subr.bf16.mxu0 0
        %614 = vmatpush2.bf16.msra.mxu0 0
        %615 = vmatprep.subr.bf16.mxu0 0
        %616 = vmatpush2.bf16.msra.mxu0 0
        %617 = vmatprep.subr.bf16.mxu0 0
        %618 = vmatpush2.bf16.msra.mxu0 0
        %619 = vmatprep.mubr.bf16.mxu0 0
        %620 = vmatmul.mubr.bf16.gmra.mxu0 %v581
        %v621 = vpop.f32.mrf.mxu0
        %v622 = vadd.f32 0.0, %v621
        %v623 = vpop.f32.mrf.mxu0
        %v624 = vpop.f32.mrf.mxu0
        %v625 = vpop.f32.mrf.mxu0
        %626 = vdwg.mxu0
        %628 = vrot.lane.b32.xlu0 %v515, 120
        %v629 = vpop.permute.xlu0 %628
        %630 = vrot.lane.b32.xlu0 %v516, 120
        %v631 = vpop.permute.xlu0 %630
        %v633 = vsel %vm517, %v629, 0
        %v636 = vsel %vm517, %v631, 0
        %638 = vmatprep.subr.bf16.mxu0 0
        %639 = vmatpush1.bf16.xpose.msra.mxu0 0
        %640 = vmatprep.subr.bf16.mxu0 0
        %641 = vmatpush1.bf16.xpose.msra.mxu0 0
        %642 = vmatprep.subr.bf16.mxu0 0
        %643 = vmatpush1.bf16.xpose.msra.mxu0 0
        %644 = vmatprep.subr.bf16.mxu0 0
        %645 = vmatpush1.bf16.xpose.msra.mxu0 0
        %646 = vmatprep.subr.bf16.mxu0 0
        %647 = vmatpush1.bf16.xpose.msra.mxu0 0
        %648 = vmatprep.subr.bf16.mxu0 0
        %649 = vmatpush1.bf16.xpose.msra.mxu0 0
        %650 = vmatprep.subr.bf16.mxu0 0
        %651 = vmatpush1.bf16.xpose.msra.mxu0 0
        %652 = vmatprep.subr.bf16.mxu0 0
        %653 = vmatpush1.bf16.xpose.msra.mxu0 %v636
        %654 = vmatprep.subr.bf16.mxu0 0
        %655 = vmatpush2.bf16.xpose.msra.mxu0 0
        %656 = vmatprep.subr.bf16.mxu0 0
        %657 = vmatpush2.bf16.xpose.msra.mxu0 0
        %658 = vmatprep.subr.bf16.mxu0 0
        %659 = vmatpush2.bf16.xpose.msra.mxu0 0
        %660 = vmatprep.subr.bf16.mxu0 0
        %661 = vmatpush2.bf16.xpose.msra.mxu0 0
        %662 = vmatprep.subr.bf16.mxu0 0
        %663 = vmatpush2.bf16.xpose.msra.mxu0 0
        %664 = vmatprep.subr.bf16.mxu0 0
        %665 = vmatpush2.bf16.xpose.msra.mxu0 0
        %666 = vmatprep.subr.bf16.mxu0 0
        %667 = vmatpush2.bf16.xpose.msra.mxu0 0
        %668 = vmatprep.subr.bf16.mxu0 0
        %669 = vmatpush2.bf16.xpose.msra.mxu0 0
        %670 = vmatprep.mubr.bf16.mxu0 0
        %671 = vmatmul.mubr.bf16.gmra.mxu0 %v633
        %v672 = vpop.f32.mrf.mxu0
        %v673 = vadd.f32 0.0, %v672
        %v674 = vpop.f32.mrf.mxu0
        %v675 = vpop.f32.mrf.mxu0
        %v676 = vpop.f32.mrf.mxu0
        %677 = vdwg.mxu0
        %v678 = vmul.f32 %v673, 0.35355338
        %v679 = vsel %vm517, %v678, -inf
        %680 = vmax.xlane.f32.xlu0 %v679
        %v681 = vpop.xlane.xlu0 %680
        %v682 = vsub.f32 %v678, %v681
        %v683 = vmul.f32 %v682, 1.442695
        %v684 = vpow.pop %v683
        %v685 = vsel %vm517, %v684, 0.0
        %686 = vadd.xlane.f32.xlu0 %v685
        %v687 = vpop.xlane.xlu0 %686
        %v688 = vrcp.pop %v687
        %v689 = vmul.f32 %v684, %v688
        %v690 = vpack.c.bf16 %v689, %v689
        %691 = vrot.lane.b32.xlu0 %v516, 88
        %v692 = vpop.permute.xlu0 %691
        %v694 = vsel %vm517, %v690, 0
        %v697 = vsel %vm583, %v692, 0
        %699 = vmatprep.subr.bf16.mxu0 0
        %700 = vmatpush1.bf16.msra.mxu0 0
        %701 = vmatprep.subr.bf16.mxu0 0
        %702 = vmatpush1.bf16.msra.mxu0 0
        %703 = vmatprep.subr.bf16.mxu0 0
        %704 = vmatpush1.bf16.msra.mxu0 0
        %705 = vmatprep.subr.bf16.mxu0 0
        %706 = vmatpush1.bf16.msra.mxu0 0
        %707 = vmatprep.subr.bf16.mxu0 0
        %708 = vmatpush1.bf16.msra.mxu0 0
        %709 = vmatprep.subr.bf16.mxu0 0
        %710 = vmatpush1.bf16.msra.mxu0 0
        %711 = vmatprep.subr.bf16.mxu0 0
        %712 = vmatpush1.bf16.msra.mxu0 0
        %713 = vmatprep.subr.bf16.mxu0 0
        %714 = vmatpush1.bf16.msra.mxu0 %v697
        %715 = vmatprep.subr.bf16.mxu0 0
        %716 = vmatpush2.bf16.msra.mxu0 0
        %717 = vmatprep.subr.bf16.mxu0 0
        %718 = vmatpush2.bf16.msra.mxu0 0
        %719 = vmatprep.subr.bf16.mxu0 0
        %720 = vmatpush2.bf16.msra.mxu0 0
        %721 = vmatprep.subr.bf16.mxu0 0
        %722 = vmatpush2.bf16.msra.mxu0 0
        %723 = vmatprep.subr.bf16.mxu0 0
        %724 = vmatpush2.bf16.msra.mxu0 0
        %725 = vmatprep.subr.bf16.mxu0 0
        %726 = vmatpush2.bf16.msra.mxu0 0
        %727 = vmatprep.subr.bf16.mxu0 0
        %728 = vmatpush2.bf16.msra.mxu0 0
        %729 = vmatprep.subr.bf16.mxu0 0
        %730 = vmatpush2.bf16.msra.mxu0 0
        %731 = vmatprep.mubr.bf16.mxu0 0
        %732 = vmatmul.mubr.bf16.gmra.mxu0 %v694
        %v733 = vpop.f32.mrf.mxu0
        %v734 = vadd.f32 0.0, %v733
        %v735 = vpop.f32.mrf.mxu0
        %v736 = vpop.f32.mrf.mxu0
        %v737 = vpop.f32.mrf.mxu0
        %738 = vdwg.mxu0
        %739 = vrot.lane.b32.xlu0 %v515, 112
        %v740 = vpop.permute.xlu0 %739
        %741 = vrot.lane.b32.xlu0 %v516, 112
        %v742 = vpop.permute.xlu0 %741
        %v744 = vsel %vm517, %v740, 0
        %v747 = vsel %vm517, %v742, 0
        %749 = vmatprep.subr.bf16.mxu0 0
        %750 = vmatpush1.bf16.xpose.msra.mxu0 0
        %751 = vmatprep.subr.bf16.mxu0 0
        %752 = vmatpush1.bf16.xpose.msra.mxu0 0
        %753 = vmatprep.subr.bf16.mxu0 0
        %754 = vmatpush1.bf16.xpose.msra.mxu0 0
        %755 = vmatprep.subr.bf16.mxu0 0
        %756 = vmatpush1.bf16.xpose.msra.mxu0 0
        %757 = vmatprep.subr.bf16.mxu0 0
        %758 = vmatpush1.bf16.xpose.msra.mxu0 0
        %759 = vmatprep.subr.bf16.mxu0 0
        %760 = vmatpush1.bf16.xpose.msra.mxu0 0
        %761 = vmatprep.subr.bf16.mxu0 0
        %762 = vmatpush1.bf16.xpose.msra.mxu0 0
        %763 = vmatprep.subr.bf16.mxu0 0
        %764 = vmatpush1.bf16.xpose.msra.mxu0 %v747
        %765 = vmatprep.subr.bf16.mxu0 0
        %766 = vmatpush2.bf16.xpose.msra.mxu0 0
        %767 = vmatprep.subr.bf16.mxu0 0
        %768 = vmatpush2.bf16.xpose.msra.mxu0 0
        %769 = vmatprep.subr.bf16.mxu0 0
        %770 = vmatpush2.bf16.xpose.msra.mxu0 0
        %771 = vmatprep.subr.bf16.mxu0 0
        %772 = vmatpush2.bf16.xpose.msra.mxu0 0
        %773 = vmatprep.subr.bf16.mxu0 0
        %774 = vmatpush2.bf16.xpose.msra.mxu0 0
        %775 = vmatprep.subr.bf16.mxu0 0
        %776 = vmatpush2.bf16.xpose.msra.mxu0 0
        %777 = vmatprep.subr.bf16.mxu0 0
        %778 = vmatpush2.bf16.xpose.msra.mxu0 0
        %779 = vmatprep.subr.bf16.mxu0 0
        %780 = vmatpush2.bf16.xpose.msra.mxu0 0
        %781 = vmatprep.mubr.bf16.mxu0 0
        %782 = vmatmul.mubr.bf16.gmra.mxu0 %v744
        %v783 = vpop.f32.mrf.mxu0
        %v784 = vadd.f32 0.0, %v783
        %v785 = vpop.f32.mrf.mxu0
        %v786 = vpop.f32.mrf.mxu0
        %v787 = vpop.f32.mrf.mxu0
        %788 = vdwg.mxu0
        %v789 = vmul.f32 %v784, 0.35355338
        %v790 = vsel %vm517, %v789, -inf
        %791 = vmax.xlane.f32.xlu0 %v790
        %v792 = vpop.xlane.xlu0 %791
        %v793 = vsub.f32 %v789, %v792
        %v794 = vmul.f32 %v793, 1.442695
        %v795 = vpow.pop %v794
        %v796 = vsel %vm517, %v795, 0.0
        %797 = vadd.xlane.f32.xlu0 %v796
        %v798 = vpop.xlane.xlu0 %797
        %v799 = vrcp.pop %v798
        %v800 = vmul.f32 %v795, %v799
        %v801 = vpack.c.bf16 %v800, %v800
        %802 = vrot.lane.b32.xlu0 %v516, 80
        %v803 = vpop.permute.xlu0 %802
        %v805 = vsel %vm517, %v801, 0
        %v808 = vsel %vm583, %v803, 0
        %810 = vmatprep.subr.bf16.mxu0 0
        %811 = vmatpush1.bf16.msra.mxu0 0
        %812 = vmatprep.subr.bf16.mxu0 0
        %813 = vmatpush1.bf16.msra.mxu0 0
        %814 = vmatprep.subr.bf16.mxu0 0
        %815 = vmatpush1.bf16.msra.mxu0 0
        %816 = vmatprep.subr.bf16.mxu0 0
        %817 = vmatpush1.bf16.msra.mxu0 0
        %818 = vmatprep.subr.bf16.mxu0 0
        %819 = vmatpush1.bf16.msra.mxu0 0
        %820 = vmatprep.subr.bf16.mxu0 0
        %821 = vmatpush1.bf16.msra.mxu0 0
        %822 = vmatprep.subr.bf16.mxu0 0
        %823 = vmatpush1.bf16.msra.mxu0 0
        %824 = vmatprep.subr.bf16.mxu0 0
        %825 = vmatpush1.bf16.msra.mxu0 %v808
        %826 = vmatprep.subr.bf16.mxu0 0
        %827 = vmatpush2.bf16.msra.mxu0 0
        %828 = vmatprep.subr.bf16.mxu0 0
        %829 = vmatpush2.bf16.msra.mxu0 0
        %830 = vmatprep.subr.bf16.mxu0 0
        %831 = vmatpush2.bf16.msra.mxu0 0
        %832 = vmatprep.subr.bf16.mxu0 0
        %833 = vmatpush2.bf16.msra.mxu0 0
        %834 = vmatprep.subr.bf16.mxu0 0
        %835 = vmatpush2.bf16.msra.mxu0 0
        %836 = vmatprep.subr.bf16.mxu0 0
        %837 = vmatpush2.bf16.msra.mxu0 0
        %838 = vmatprep.subr.bf16.mxu0 0
        %839 = vmatpush2.bf16.msra.mxu0 0
        %840 = vmatprep.subr.bf16.mxu0 0
        %841 = vmatpush2.bf16.msra.mxu0 0
        %842 = vmatprep.mubr.bf16.mxu0 0
        %843 = vmatmul.mubr.bf16.gmra.mxu0 %v805
        %v844 = vpop.f32.mrf.mxu0
        %v845 = vadd.f32 0.0, %v844
        %v846 = vpop.f32.mrf.mxu0
        %v847 = vpop.f32.mrf.mxu0
        %v848 = vpop.f32.mrf.mxu0
        %849 = vdwg.mxu0
        %850 = vrot.lane.b32.xlu0 %v515, 104
        %v851 = vpop.permute.xlu0 %850
        %852 = vrot.lane.b32.xlu0 %v516, 104
        %v853 = vpop.permute.xlu0 %852
        %v855 = vsel %vm517, %v851, 0
        %v858 = vsel %vm517, %v853, 0
        %860 = vmatprep.subr.bf16.mxu0 0
        %861 = vmatpush1.bf16.xpose.msra.mxu0 0
        %862 = vmatprep.subr.bf16.mxu0 0
        %863 = vmatpush1.bf16.xpose.msra.mxu0 0
        %864 = vmatprep.subr.bf16.mxu0 0
        %865 = vmatpush1.bf16.xpose.msra.mxu0 0
        %866 = vmatprep.subr.bf16.mxu0 0
        %867 = vmatpush1.bf16.xpose.msra.mxu0 0
        %868 = vmatprep.subr.bf16.mxu0 0
        %869 = vmatpush1.bf16.xpose.msra.mxu0 0
        %870 = vmatprep.subr.bf16.mxu0 0
        %871 = vmatpush1.bf16.xpose.msra.mxu0 0
        %872 = vmatprep.subr.bf16.mxu0 0
        %873 = vmatpush1.bf16.xpose.msra.mxu0 0
        %874 = vmatprep.subr.bf16.mxu0 0
        %875 = vmatpush1.bf16.xpose.msra.mxu0 %v858
        %876 = vmatprep.subr.bf16.mxu0 0
        %877 = vmatpush2.bf16.xpose.msra.mxu0 0
        %878 = vmatprep.subr.bf16.mxu0 0
        %879 = vmatpush2.bf16.xpose.msra.mxu0 0
        %880 = vmatprep.subr.bf16.mxu0 0
        %881 = vmatpush2.bf16.xpose.msra.mxu0 0
        %882 = vmatprep.subr.bf16.mxu0 0
        %883 = vmatpush2.bf16.xpose.msra.mxu0 0
        %884 = vmatprep.subr.bf16.mxu0 0
        %885 = vmatpush2.bf16.xpose.msra.mxu0 0
        %886 = vmatprep.subr.bf16.mxu0 0
        %887 = vmatpush2.bf16.xpose.msra.mxu0 0
        %888 = vmatprep.subr.bf16.mxu0 0
        %889 = vmatpush2.bf16.xpose.msra.mxu0 0
        %890 = vmatprep.subr.bf16.mxu0 0
        %891 = vmatpush2.bf16.xpose.msra.mxu0 0
        %892 = vmatprep.mubr.bf16.mxu0 0
        %893 = vmatmul.mubr.bf16.gmra.mxu0 %v855
        %v894 = vpop.f32.mrf.mxu0
        %v895 = vadd.f32 0.0, %v894
        %v896 = vpop.f32.mrf.mxu0
        %v897 = vpop.f32.mrf.mxu0
        %v898 = vpop.f32.mrf.mxu0
        %899 = vdwg.mxu0
        %v900 = vmul.f32 %v895, 0.35355338
        %v901 = vsel %vm517, %v900, -inf
        %902 = vmax.xlane.f32.xlu0 %v901
        %v903 = vpop.xlane.xlu0 %902
        %v904 = vsub.f32 %v900, %v903
        %v905 = vmul.f32 %v904, 1.442695
        %v906 = vpow.pop %v905
        %v907 = vsel %vm517, %v906, 0.0
        %908 = vadd.xlane.f32.xlu0 %v907
        %v909 = vpop.xlane.xlu0 %908
        %v910 = vrcp.pop %v909
        %v911 = vmul.f32 %v906, %v910
        %v912 = vpack.c.bf16 %v911, %v911
        %913 = vrot.lane.b32.xlu0 %v516, 72
        %v914 = vpop.permute.xlu0 %913
        %v916 = vsel %vm517, %v912, 0
        %v919 = vsel %vm583, %v914, 0
        %921 = vmatprep.subr.bf16.mxu0 0
        %922 = vmatpush1.bf16.msra.mxu0 0
        %923 = vmatprep.subr.bf16.mxu0 0
        %924 = vmatpush1.bf16.msra.mxu0 0
        %925 = vmatprep.subr.bf16.mxu0 0
        %926 = vmatpush1.bf16.msra.mxu0 0
        %927 = vmatprep.subr.bf16.mxu0 0
        %928 = vmatpush1.bf16.msra.mxu0 0
        %929 = vmatprep.subr.bf16.mxu0 0
        %930 = vmatpush1.bf16.msra.mxu0 0
        %931 = vmatprep.subr.bf16.mxu0 0
        %932 = vmatpush1.bf16.msra.mxu0 0
        %933 = vmatprep.subr.bf16.mxu0 0
        %934 = vmatpush1.bf16.msra.mxu0 0
        %935 = vmatprep.subr.bf16.mxu0 0
        %936 = vmatpush1.bf16.msra.mxu0 %v919
        %937 = vmatprep.subr.bf16.mxu0 0
        %938 = vmatpush2.bf16.msra.mxu0 0
        %939 = vmatprep.subr.bf16.mxu0 0
        %940 = vmatpush2.bf16.msra.mxu0 0
        %941 = vmatprep.subr.bf16.mxu0 0
        %942 = vmatpush2.bf16.msra.mxu0 0
        %943 = vmatprep.subr.bf16.mxu0 0
        %944 = vmatpush2.bf16.msra.mxu0 0
        %945 = vmatprep.subr.bf16.mxu0 0
        %946 = vmatpush2.bf16.msra.mxu0 0
        %947 = vmatprep.subr.bf16.mxu0 0
        %948 = vmatpush2.bf16.msra.mxu0 0
        %949 = vmatprep.subr.bf16.mxu0 0
        %950 = vmatpush2.bf16.msra.mxu0 0
        %951 = vmatprep.subr.bf16.mxu0 0
        %952 = vmatpush2.bf16.msra.mxu0 0
        %953 = vmatprep.mubr.bf16.mxu0 0
        %954 = vmatmul.mubr.bf16.gmra.mxu0 %v916
        %v955 = vpop.f32.mrf.mxu0
        %v956 = vadd.f32 0.0, %v955
        %v957 = vpop.f32.mrf.mxu0
        %v958 = vpop.f32.mrf.mxu0
        %v959 = vpop.f32.mrf.mxu0
        %960 = vdwg.mxu0
        %962 = vrot.lane.b32.xlu0 %v734, 8
        %v963 = vpop.permute.xlu0 %962
        %966 = vrot.lane.b32.xlu0 %v845, 16
        %v967 = vpop.permute.xlu0 %966
        %970 = vrot.lane.b32.xlu0 %v956, 24
        %v971 = vpop.permute.xlu0 %970
        %v973 = vsel %vm517, %v622, %v963
        %vm974 = vcmask 130048
        %v975 = vsel %vm974, %v973, %v967
        %vm976 = vcmask 195584
        %v977 = vsel %vm976, %v975, %v971
        %v978 = vpack.c.bf16 %v977, %v977
        %v979 = vld [vmem:[#allocation10] sm:$0xf]
        %v980 = vld [vmem:[#allocation10 + $0x4] sm:$0xf]
        %v981 = vld [vmem:[#allocation10 + $0x8] sm:$0xf]
        %v982 = vld [vmem:[#allocation10 + $0xc] sm:$0xf]
        %v983 = vld [vmem:[%s7] sm:$0x1]
        %v985 = vlaneseq
        %v986 = vshrl.u32 %v985, 7
        %v987 = vsub.s32 0, %v986
        %v988 = vrot.slane %v983, %v987
        %v994 = vunpack.c.l.b16 %v979
        %v995 = vunpack.c.l.b16 %v980
        %v996 = vunpack.c.l.b16 %v981
        %v997 = vunpack.c.l.b16 %v982
        %v998 = vpack.c.b16 %v995, %v994
        %v999 = vpack.c.b16 %v997, %v996
        %v1003 = vsel %vm405, %v978, 0
        %1005 = vmatprep.subr.bf16.mxu0 0
        %1006 = vmatpush1.bf16.msra.mxu0 0
        %1007 = vmatprep.subr.bf16.mxu0 0
        %1008 = vmatpush1.bf16.msra.mxu0 0
        %1009 = vmatprep.subr.bf16.mxu0 0
        %1010 = vmatpush1.bf16.msra.mxu0 0
        %1011 = vmatprep.subr.bf16.mxu0 0
        %1012 = vmatpush1.bf16.msra.mxu0 0
        %1013 = vmatprep.subr.bf16.mxu0 0
        %1014 = vmatpush1.bf16.msra.mxu0 0
        %1015 = vmatprep.subr.bf16.mxu0 0
        %1016 = vmatpush1.bf16.msra.mxu0 0
        %1017 = vmatprep.subr.bf16.mxu0 0
        %1018 = vmatpush1.bf16.msra.mxu0 %v999
        %1019 = vmatprep.subr.bf16.mxu0 0
        %1020 = vmatpush1.bf16.msra.mxu0 %v998
        %1021 = vmatprep.subr.bf16.mxu0 0
        %1022 = vmatpush2.bf16.msra.mxu0 0
        %1023 = vmatprep.subr.bf16.mxu0 0
        %1024 = vmatpush2.bf16.msra.mxu0 0
        %1025 = vmatprep.subr.bf16.mxu0 0
        %1026 = vmatpush2.bf16.msra.mxu0 0
        %1027 = vmatprep.subr.bf16.mxu0 0
        %1028 = vmatpush2.bf16.msra.mxu0 0
        %1029 = vmatprep.subr.bf16.mxu0 0
        %1030 = vmatpush2.bf16.msra.mxu0 0
        %1031 = vmatprep.subr.bf16.mxu0 0
        %1032 = vmatpush2.bf16.msra.mxu0 0
        %1033 = vmatprep.subr.bf16.mxu0 0
        %1034 = vmatpush2.bf16.msra.mxu0 0
        %1035 = vmatprep.subr.bf16.mxu0 0
        %1036 = vmatpush2.bf16.msra.mxu0 0
        %1037 = vmatprep.mubr.bf16.mxu0 0
        %1038 = vmatmul.mubr.bf16.gmra.mxu0 %v1003
        %v1039 = vpop.f32.mrf.mxu0
        %v1040 = vadd.f32 %v988, %v1039
        %v1041 = vpop.f32.mrf.mxu0
        %v1042 = vpop.f32.mrf.mxu0
        %v1043 = vpop.f32.mrf.mxu0
        %1044 = vdwg.mxu0
        %v1045 = vpack.c.bf16 %v1040, %v1040
        %vm1046 = vcmask 257024
        %1047 = vst.msk [vmem:[%s376] sm:$0xf] %vm1046, %v1045
        %s1048 = sand.u32 %s208, 1
        %s1049 = scalar_lea.sflag [#allocation4], %s1048
        %s1050 = sand.u32 %s208, 1
        %s1051 = smul.addr %s1050, 4
        %s1052 = scalar_lea.vmem [#allocation11], %s1051
        // Predicated region
        $region73: #{tpu_custom_call.1} parent=51 // pred_check
          %p1053 = pneg %p218
        $region74: #{tpu_custom_call.1} parent=51 // pred_check_branch
          %1055 = sbr.rel (%p1053) target = $region76
        $region75: #{tpu_custom_call.1} parent=51 // pred_region
          %s1057 = ssub.s32 64, 64
          %1058 = vsyncadd %s1049, %s1057
          %s1059 = smul.addr %s27, 64
          %s1060 = scalar_lea.hbm %s8, %s1059
          %s1062 = sshll.u32 %s1052, 4
          %s1063 = int_to_ptr.vmem [resolvable:$true] %s1062
          %1065 = dma.vmem_to_hbm [thread:$0]  %s1063, 64, %s1060, %s1049
        $region76: #{tpu_custom_call.1} parent=51 // pred_fallthru
          _
      $region52: #{tpu_custom_call.1} parent=5 // pred_fallthru
        _
      %p1066 = scmp.le.s32.totalorder 2, %s22
      // Predicated region
      $region77: #{tpu_custom_call.1} parent=5 // pred_check
        %p1067 = pneg %p1066
      $region78: #{tpu_custom_call.1} parent=5 // pred_check_branch
        %1069 = sbr.rel (%p1067) target = $region80
      $region79: #{tpu_custom_call.1} parent=5 // pred_region
        %s1070 = ssub.s32 %s22, 2
        // Predicated region
        $region81: #{tpu_custom_call.1} parent=79 // pred_check
          %p1071 = pneg %p224
        $region82: #{tpu_custom_call.1} parent=79 // pred_check_branch
          %1073 = sbr.rel (%p1071) target = $region84
        $region83: #{tpu_custom_call.1} parent=79 // pred_region
          %s1074 = sand.u32 %s209, 1
          %s1075 = scalar_lea.sflag [#allocation4], %s1074
          %s1076 = sand.u32 %s209, 1
          %s1077 = smul.addr %s1076, 4
          %s1078 = scalar_lea.vmem [#allocation11], %s1077
          %1079 = dma.done %s1075, 64
        $region84: #{tpu_custom_call.1} parent=79 // pred_fallthru
          _
      $region80: #{tpu_custom_call.1} parent=5 // pred_fallthru
        _
    $region6: #{tpu_custom_call.1} parent=1 // loop_footer
      %s26 = sadd.s32 1, %s22
    $region7: #{tpu_custom_call.1} parent=1 // loop_footer_branch
      %21 = sbr.rel target = $region3
    $region8: #{tpu_custom_call.1} parent=1 // loop_exit
      _
    %1080 = vsyncpa [#allocation3], 1
    %s1081 = scalar_lea.sflag [#allocation3], 1
    %1082 = vsyncpa %s1081, 1
    %1083 = vsyncpa [#allocation6], 1
    %s1084 = scalar_lea.sflag [#allocation6], 1
    %1085 = vsyncpa %s1084, 1
    %1086 = vsyncpa [#allocation9], 1
    %1087 = vsyncpa [#allocation4], 1
    %s1088 = scalar_lea.sflag [#allocation4], 1
    %1089 = vsyncpa %s1088, 1

</llo_original>
